<compile_context>
chip_gen: v6e
topology: v6e:2x2x1
jax: 0.10.0
libtpu: 0.0.40
codegen_flags: <defaults>
</compile_context>

<pallas_src>
import functools
import math

import jax
import jax.numpy as jnp
import numpy as np
from jax.experimental import pallas as pl
from jax.experimental.pallas import tpu as pltpu


def transformer_kernel(x_ref, w_in_t_ref, b_in_ref, w_out_hd_ref, b_out_ref,
                       w1_t_ref, b1_ref, w2_t_ref, b2_ref, o_ref,
                       *, seq_len, batch, num_heads):
    L, N, H = seq_len, batch, num_heads
    NL, E = x_ref.shape                      # NL = N*L, row r = n*L + l (batch-major)
    hd = E // H

    xf = x_ref[...].astype(jnp.float32)      # (NL, E) f32, kept for residuals
    x_bf = xf.astype(jnp.bfloat16)

    # ---- in-projection: qkv = x @ W_in^T + b_in  (q-scale pre-folded into weights) ----
    qkv = jnp.dot(x_bf, w_in_t_ref[...], preferred_element_type=jnp.float32)
    qkv = qkv + b_in_ref[...]                # (NL, 3E) f32

    q = qkv[:, :E]
    k = qkv[:, E:2 * E]
    v = qkv[:, 2 * E:3 * E]

    # ---- per-(batch, head) operands: (N*H, L, hd), batch-major rows -> static slices ----
    def split_bh(t):
        t = t.astype(jnp.bfloat16)
        return jnp.stack(
            [t[n_i * L:(n_i + 1) * L, h_i * hd:(h_i + 1) * hd]
             for n_i in range(N) for h_i in range(H)], axis=0)      # (N*H, L, hd)

    qh, kh, vh = split_bh(q), split_bh(k), split_bh(v)

    # ---- batched attention over b = (n, h): scores are (N*H, L, L), no mask needed ----
    s = jnp.einsum('bqd,bkd->bqk', qh, kh,
                   preferred_element_type=jnp.float32)               # (N*H, L, L)
    m = jnp.max(s, axis=-1, keepdims=True)
    p = jnp.exp(s - m)
    p = p * pl.reciprocal(jnp.sum(p, axis=-1, keepdims=True), approx=True)
    o = jnp.einsum('bqk,bkd->bqd', p.astype(jnp.bfloat16), vh,
                   preferred_element_type=jnp.float32)               # (N*H, L, hd)

    # ---- output projection with the head re-concat folded in:
    #      attn[n*L+l, :] = sum_h o[n*H+h, l, :] @ W_out^T[h*hd:(h+1)*hd, :]  ----
    attn_rows = []
    for n_i in range(N):
        o_n = o[n_i * H:(n_i + 1) * H].astype(jnp.bfloat16)          # (H, L, hd)
        proj = jnp.einsum('hqd,hde->hqe', o_n, w_out_hd_ref[...],
                          preferred_element_type=jnp.float32)        # (H, L, E)
        acc = proj[0]
        for h_i in range(1, H):
            acc = acc + proj[h_i]
        attn_rows.append(acc)                                        # (L, E)
    attn_proj = jnp.concatenate(attn_rows, axis=0) + b_out_ref[...]  # (NL, E)
    x1 = xf + attn_proj

    # ---- feed-forward (Linear -> ReLU -> Linear) + residual ----
    h1 = jnp.dot(x1.astype(jnp.bfloat16), w1_t_ref[...],
                 preferred_element_type=jnp.float32) + b1_ref[...]
    h1 = jnp.maximum(h1, 0.0)
    ff = jnp.dot(h1.astype(jnp.bfloat16), w2_t_ref[...],
                 preferred_element_type=jnp.float32) + b2_ref[...]
    x2 = x1 + ff                                                     # (NL, E) f32

    # ---- LayerNorm over (batch, embed) per sequence position l, on the native
    #      (NL, E) layout: lane reductions + tiny (L,1) cross-batch combines ----
    inv_cnt = 1.0 / (N * E)
    row_sum = jnp.sum(x2, axis=-1, keepdims=True)                    # (NL, 1)
    sum_l = row_sum[0:L]
    for n_i in range(1, N):
        sum_l = sum_l + row_sum[n_i * L:(n_i + 1) * L]               # (L, 1)
    mu_rows = jnp.concatenate([sum_l * inv_cnt] * N, axis=0)         # (NL, 1)
    xc = x2 - mu_rows
    row_sq = jnp.sum(xc * xc, axis=-1, keepdims=True)                # (NL, 1)
    sq_l = row_sq[0:L]
    for n_i in range(1, N):
        sq_l = sq_l + row_sq[n_i * L:(n_i + 1) * L]                  # (L, 1)
    rstd_rows = jnp.concatenate(
        [jax.lax.rsqrt(sq_l * inv_cnt + 1e-6)] * N, axis=0)          # (NL, 1)

    o_ref[...] = (xc * rstd_rows).astype(o_ref.dtype)


def prepare_params(params, num_heads):
    """One-time host-side prep: transpose to (in,out), cast to bf16, fold q-scale,
    and reshape W_out^T per head so the kernel never re-concats heads."""
    w_in, b_in, w_out, b_out, w1, b1, w2, b2 = params
    E = w_out.shape[0]
    FF = w1.shape[0]
    hd = E // num_heads
    scale = 1.0 / math.sqrt(hd)

    col_scale = jnp.concatenate([jnp.full((E,), scale, jnp.float32),
                                 jnp.ones((2 * E,), jnp.float32)])
    w_in_t = jnp.asarray(w_in, jnp.float32).T * col_scale[None, :]     # (E, 3E)
    b_in_f = jnp.asarray(b_in, jnp.float32) * col_scale
    w_out_hd = jnp.asarray(w_out, jnp.float32).T.reshape(num_heads, hd, E)

    return (
        w_in_t.astype(jnp.bfloat16),                                   # (E, 3E)
        b_in_f.reshape(1, 3 * E),
        w_out_hd.astype(jnp.bfloat16),                                  # (H, hd, E)
        jnp.asarray(b_out, jnp.float32).reshape(1, E),
        jnp.asarray(w1, jnp.float32).T.astype(jnp.bfloat16),            # (E, FF)
        jnp.asarray(b1, jnp.float32).reshape(1, FF),
        jnp.asarray(w2, jnp.float32).T.astype(jnp.bfloat16),            # (FF, E)
        jnp.asarray(b2, jnp.float32).reshape(1, E),
    )


@functools.partial(jax.jit, static_argnames=("num_heads",))
def transformer_forward(x, prepared_params, num_heads):
    L, N, E = x.shape
    NL = N * L

    # Batch-major lane/sublane-dense slab: row = n*L + l.
    x_slab = jnp.transpose(x, (1, 0, 2)).reshape(NL, E)

    kernel = functools.partial(transformer_kernel, seq_len=L, batch=N,
                               num_heads=num_heads)
    out = pl.pallas_call(
        kernel,
        out_shape=jax.ShapeDtypeStruct((NL, E), x.dtype),
        in_specs=[pl.BlockSpec(memory_space=pltpu.MemorySpace.VMEM)] * 9,
        out_specs=pl.BlockSpec(memory_space=pltpu.MemorySpace.VMEM),
        compiler_params=pltpu.CompilerParams(vmem_limit_bytes=32 * 1024 * 1024),
    )(x_slab, *prepared_params)
    return jnp.transpose(out.reshape(N, L, E), (1, 0, 2))


def transformer_reference(x, params, num_heads):
    """Pure-JAX f32 reference matching PyTorch semantics (eval mode, no dropout)."""
    w_in, b_in, w_out, b_out, w1, b1, w2, b2 = params
    L, N, E = x.shape
    H, hd = num_heads, E // num_heads
    qkv = x @ w_in.T + b_in
    q, k, v = jnp.split(qkv, 3, axis=-1)
    heads = lambda t: t.reshape(L, N, H, hd).transpose(1, 2, 0, 3)   # (N,H,L,hd)
    qh, kh, vh = heads(q), heads(k), heads(v)
    s = jnp.einsum('nhld,nhmd->nhlm', qh, kh) / math.sqrt(hd)
    p = jax.nn.softmax(s, axis=-1)
    o = jnp.einsum('nhlm,nhmd->nhld', p, vh).transpose(2, 0, 1, 3).reshape(L, N, E)
    attn = o @ w_out.T + b_out
    x1 = x + attn
    x2 = x1 + (jax.nn.relu(x1 @ w1.T + b1) @ w2.T + b2)
    mu = x2.mean(axis=(1, 2), keepdims=True)
    var = ((x2 - mu) ** 2).mean(axis=(1, 2), keepdims=True)
    return (x2 - mu) / jnp.sqrt(var + 1e-6)


if __name__ == "__main__":
    # Small shapes: seq L=8, batch N=2, embed E=128, heads=4, ff=256.
    L, N, E, H, FF = 8, 2, 128, 4, 256
    key = jax.random.PRNGKey(0)
    ks = jax.random.split(key, 9)

    x = jax.random.normal(ks[0], (L, N, E), dtype=jnp.float32)
    params = (
        0.02 * jax.random.normal(ks[1], (3 * E, E), dtype=jnp.float32),   # in_proj_weight
        0.02 * jax.random.normal(ks[2], (3 * E,), dtype=jnp.float32),     # in_proj_bias
        0.02 * jax.random.normal(ks[3], (E, E), dtype=jnp.float32),       # out_proj.weight
        0.02 * jax.random.normal(ks[4], (E,), dtype=jnp.float32),         # out_proj.bias
        0.02 * jax.random.normal(ks[5], (FF, E), dtype=jnp.float32),      # ff[0].weight
        0.02 * jax.random.normal(ks[6], (FF,), dtype=jnp.float32),        # ff[0].bias
        0.02 * jax.random.normal(ks[7], (E, FF), dtype=jnp.float32),      # ff[2].weight
        0.02 * jax.random.normal(ks[8], (E,), dtype=jnp.float32),         # ff[2].bias
    )

    prepared = prepare_params(params, num_heads=H)     # one-time weight prep
    out = transformer_forward(x, prepared, num_heads=H)
    out = jax.block_until_ready(out)

    ref = jax.block_until_ready(transformer_reference(x, params, num_heads=H))
    assert out.shape == (L, N, E)
    assert np.all(np.isfinite(np.asarray(out)))
    assert np.allclose(np.asarray(out), np.asarray(ref), rtol=1e-2, atol=1e-2)

    print("KERNEL_OK")
</pallas_src>

<mosaic_0001>
module attributes {stable_mosaic.version = 11 : i64} {
  func.func @transformer_kernel(%arg0: memref<16x128xf32, #tpu.memory_space<vmem>>, %arg1: memref<128x384xbf16, #tpu.memory_space<vmem>>, %arg2: memref<1x384xf32, #tpu.memory_space<vmem>>, %arg3: memref<4x32x128xbf16, #tpu.memory_space<vmem>>, %arg4: memref<1x128xf32, #tpu.memory_space<vmem>>, %arg5: memref<128x256xbf16, #tpu.memory_space<vmem>>, %arg6: memref<1x256xf32, #tpu.memory_space<vmem>>, %arg7: memref<256x128xbf16, #tpu.memory_space<vmem>>, %arg8: memref<1x128xf32, #tpu.memory_space<vmem>>, %arg9: memref<16x128xf32, #tpu.memory_space<vmem>>) attributes {dimension_semantics = [], scalar_prefetch = 0 : i64, scratch_operands = 0 : i64, tpu.core_type = #tpu.core_type<tc>} {
    %c0 = arith.constant 0 : index
    %c0_0 = arith.constant 0 : index
    %0 = vector.load %arg0[%c0, %c0_0] : memref<16x128xf32, #tpu.memory_space<vmem>>, vector<16x128xf32>
    %1 = arith.truncf %0 : vector<16x128xf32> to vector<16x128xbf16>
    %c0_1 = arith.constant 0 : index
    %c0_2 = arith.constant 0 : index
    %2 = vector.load %arg1[%c0_1, %c0_2] : memref<128x384xbf16, #tpu.memory_space<vmem>>, vector<128x384xbf16>
    %cst = arith.constant dense<0.000000e+00> : vector<16x384xf32>
    %3 = tpu.matmul %1, %2, %cst {dimension_numbers = #tpu.dot_dimension_numbers<[1], [0], [0], [1], [0, 0, 1, 1], [], []>} : vector<16x128xbf16>, vector<128x384xbf16>, vector<16x384xf32> -> vector<16x384xf32>
    %c0_3 = arith.constant 0 : index
    %c0_4 = arith.constant 0 : index
    %4 = vector.load %arg2[%c0_3, %c0_4] : memref<1x384xf32, #tpu.memory_space<vmem>>, vector<1x384xf32>
    %5 = vector.broadcast %4 : vector<1x384xf32> to vector<16x384xf32>
    %6 = arith.addf %3, %5 : vector<16x384xf32>
    %7 = vector.extract_strided_slice %6 {offsets = [0, 0], sizes = [16, 128], strides = [1, 1]} : vector<16x384xf32> to vector<16x128xf32>
    %8 = vector.extract_strided_slice %6 {offsets = [0, 128], sizes = [16, 128], strides = [1, 1]} : vector<16x384xf32> to vector<16x128xf32>
    %9 = vector.extract_strided_slice %6 {offsets = [0, 256], sizes = [16, 128], strides = [1, 1]} : vector<16x384xf32> to vector<16x128xf32>
    %10 = arith.truncf %7 : vector<16x128xf32> to vector<16x128xbf16>
    %11 = vector.extract_strided_slice %10 {offsets = [0, 0], sizes = [8, 32], strides = [1, 1]} : vector<16x128xbf16> to vector<8x32xbf16>
    %12 = vector.extract_strided_slice %10 {offsets = [0, 32], sizes = [8, 32], strides = [1, 1]} : vector<16x128xbf16> to vector<8x32xbf16>
    %13 = vector.extract_strided_slice %10 {offsets = [0, 64], sizes = [8, 32], strides = [1, 1]} : vector<16x128xbf16> to vector<8x32xbf16>
    %14 = vector.extract_strided_slice %10 {offsets = [0, 96], sizes = [8, 32], strides = [1, 1]} : vector<16x128xbf16> to vector<8x32xbf16>
    %15 = vector.extract_strided_slice %10 {offsets = [8, 0], sizes = [8, 32], strides = [1, 1]} : vector<16x128xbf16> to vector<8x32xbf16>
    %16 = vector.extract_strided_slice %10 {offsets = [8, 32], sizes = [8, 32], strides = [1, 1]} : vector<16x128xbf16> to vector<8x32xbf16>
    %17 = vector.extract_strided_slice %10 {offsets = [8, 64], sizes = [8, 32], strides = [1, 1]} : vector<16x128xbf16> to vector<8x32xbf16>
    %18 = vector.extract_strided_slice %10 {offsets = [8, 96], sizes = [8, 32], strides = [1, 1]} : vector<16x128xbf16> to vector<8x32xbf16>
    %19 = vector.shape_cast %11 : vector<8x32xbf16> to vector<1x8x32xbf16>
    %20 = vector.shape_cast %12 : vector<8x32xbf16> to vector<1x8x32xbf16>
    %21 = vector.shape_cast %13 : vector<8x32xbf16> to vector<1x8x32xbf16>
    %22 = vector.shape_cast %14 : vector<8x32xbf16> to vector<1x8x32xbf16>
    %23 = vector.shape_cast %15 : vector<8x32xbf16> to vector<1x8x32xbf16>
    %24 = vector.shape_cast %16 : vector<8x32xbf16> to vector<1x8x32xbf16>
    %25 = vector.shape_cast %17 : vector<8x32xbf16> to vector<1x8x32xbf16>
    %26 = vector.shape_cast %18 : vector<8x32xbf16> to vector<1x8x32xbf16>
    %27 = tpu.concatenate %19, %20, %21, %22, %23, %24, %25, %26 in 0 : vector<1x8x32xbf16>, vector<1x8x32xbf16>, vector<1x8x32xbf16>, vector<1x8x32xbf16>, vector<1x8x32xbf16>, vector<1x8x32xbf16>, vector<1x8x32xbf16>, vector<1x8x32xbf16> -> vector<8x8x32xbf16>
    %28 = arith.truncf %8 : vector<16x128xf32> to vector<16x128xbf16>
    %29 = vector.extract_strided_slice %28 {offsets = [0, 0], sizes = [8, 32], strides = [1, 1]} : vector<16x128xbf16> to vector<8x32xbf16>
    %30 = vector.extract_strided_slice %28 {offsets = [0, 32], sizes = [8, 32], strides = [1, 1]} : vector<16x128xbf16> to vector<8x32xbf16>
    %31 = vector.extract_strided_slice %28 {offsets = [0, 64], sizes = [8, 32], strides = [1, 1]} : vector<16x128xbf16> to vector<8x32xbf16>
    %32 = vector.extract_strided_slice %28 {offsets = [0, 96], sizes = [8, 32], strides = [1, 1]} : vector<16x128xbf16> to vector<8x32xbf16>
    %33 = vector.extract_strided_slice %28 {offsets = [8, 0], sizes = [8, 32], strides = [1, 1]} : vector<16x128xbf16> to vector<8x32xbf16>
    %34 = vector.extract_strided_slice %28 {offsets = [8, 32], sizes = [8, 32], strides = [1, 1]} : vector<16x128xbf16> to vector<8x32xbf16>
    %35 = vector.extract_strided_slice %28 {offsets = [8, 64], sizes = [8, 32], strides = [1, 1]} : vector<16x128xbf16> to vector<8x32xbf16>
    %36 = vector.extract_strided_slice %28 {offsets = [8, 96], sizes = [8, 32], strides = [1, 1]} : vector<16x128xbf16> to vector<8x32xbf16>
    %37 = vector.shape_cast %29 : vector<8x32xbf16> to vector<1x8x32xbf16>
    %38 = vector.shape_cast %30 : vector<8x32xbf16> to vector<1x8x32xbf16>
    %39 = vector.shape_cast %31 : vector<8x32xbf16> to vector<1x8x32xbf16>
    %40 = vector.shape_cast %32 : vector<8x32xbf16> to vector<1x8x32xbf16>
    %41 = vector.shape_cast %33 : vector<8x32xbf16> to vector<1x8x32xbf16>
    %42 = vector.shape_cast %34 : vector<8x32xbf16> to vector<1x8x32xbf16>
    %43 = vector.shape_cast %35 : vector<8x32xbf16> to vector<1x8x32xbf16>
    %44 = vector.shape_cast %36 : vector<8x32xbf16> to vector<1x8x32xbf16>
    %45 = tpu.concatenate %37, %38, %39, %40, %41, %42, %43, %44 in 0 : vector<1x8x32xbf16>, vector<1x8x32xbf16>, vector<1x8x32xbf16>, vector<1x8x32xbf16>, vector<1x8x32xbf16>, vector<1x8x32xbf16>, vector<1x8x32xbf16>, vector<1x8x32xbf16> -> vector<8x8x32xbf16>
    %46 = arith.truncf %9 : vector<16x128xf32> to vector<16x128xbf16>
    %47 = vector.extract_strided_slice %46 {offsets = [0, 0], sizes = [8, 32], strides = [1, 1]} : vector<16x128xbf16> to vector<8x32xbf16>
    %48 = vector.extract_strided_slice %46 {offsets = [0, 32], sizes = [8, 32], strides = [1, 1]} : vector<16x128xbf16> to vector<8x32xbf16>
    %49 = vector.extract_strided_slice %46 {offsets = [0, 64], sizes = [8, 32], strides = [1, 1]} : vector<16x128xbf16> to vector<8x32xbf16>
    %50 = vector.extract_strided_slice %46 {offsets = [0, 96], sizes = [8, 32], strides = [1, 1]} : vector<16x128xbf16> to vector<8x32xbf16>
    %51 = vector.extract_strided_slice %46 {offsets = [8, 0], sizes = [8, 32], strides = [1, 1]} : vector<16x128xbf16> to vector<8x32xbf16>
    %52 = vector.extract_strided_slice %46 {offsets = [8, 32], sizes = [8, 32], strides = [1, 1]} : vector<16x128xbf16> to vector<8x32xbf16>
    %53 = vector.extract_strided_slice %46 {offsets = [8, 64], sizes = [8, 32], strides = [1, 1]} : vector<16x128xbf16> to vector<8x32xbf16>
    %54 = vector.extract_strided_slice %46 {offsets = [8, 96], sizes = [8, 32], strides = [1, 1]} : vector<16x128xbf16> to vector<8x32xbf16>
    %55 = vector.shape_cast %47 : vector<8x32xbf16> to vector<1x8x32xbf16>
    %56 = vector.shape_cast %48 : vector<8x32xbf16> to vector<1x8x32xbf16>
    %57 = vector.shape_cast %49 : vector<8x32xbf16> to vector<1x8x32xbf16>
    %58 = vector.shape_cast %50 : vector<8x32xbf16> to vector<1x8x32xbf16>
    %59 = vector.shape_cast %51 : vector<8x32xbf16> to vector<1x8x32xbf16>
    %60 = vector.shape_cast %52 : vector<8x32xbf16> to vector<1x8x32xbf16>
    %61 = vector.shape_cast %53 : vector<8x32xbf16> to vector<1x8x32xbf16>
    %62 = vector.shape_cast %54 : vector<8x32xbf16> to vector<1x8x32xbf16>
    %63 = tpu.concatenate %55, %56, %57, %58, %59, %60, %61, %62 in 0 : vector<1x8x32xbf16>, vector<1x8x32xbf16>, vector<1x8x32xbf16>, vector<1x8x32xbf16>, vector<1x8x32xbf16>, vector<1x8x32xbf16>, vector<1x8x32xbf16>, vector<1x8x32xbf16> -> vector<8x8x32xbf16>
    "tpu.trace_start"() <{level = 10 : i32, message = "bqd,bkd->bqk"}> : () -> ()
    %cst_5 = arith.constant dense<0.000000e+00> : vector<8x8x8xf32>
    %64 = tpu.matmul %27, %45, %cst_5 {dimension_numbers = #tpu.dot_dimension_numbers<[2], [2], [1], [1], [0, 0, 0, 1, 1, 1], [0], [0]>} : vector<8x8x32xbf16>, vector<8x8x32xbf16>, vector<8x8x8xf32> -> vector<8x8x8xf32>
    "tpu.trace_stop"() : () -> ()
    %cst_6 = arith.constant dense<0xFF800000> : vector<8x8xf32>
    %65 = vector.multi_reduction <maximumf>, %64, %cst_6 [2] : vector<8x8x8xf32> to vector<8x8xf32>
    %66 = vector.shape_cast %65 : vector<8x8xf32> to vector<8x8x1xf32>
    %67 = vector.broadcast %66 : vector<8x8x1xf32> to vector<8x8x8xf32>
    %68 = arith.subf %64, %67 : vector<8x8x8xf32>
    %69 = math.exp %68 : vector<8x8x8xf32>
    %cst_7 = arith.constant dense<0.000000e+00> : vector<8x8xf32>
    %70 = vector.multi_reduction <add>, %69, %cst_7 [2] : vector<8x8x8xf32> to vector<8x8xf32>
    %71 = vector.shape_cast %70 : vector<8x8xf32> to vector<8x8x1xf32>
    %72 = tpu.reciprocal %71 {approx = true} : vector<8x8x1xf32> -> vector<8x8x1xf32>
    %73 = vector.broadcast %72 : vector<8x8x1xf32> to vector<8x8x8xf32>
    %74 = arith.mulf %69, %73 : vector<8x8x8xf32>
    %75 = arith.truncf %74 : vector<8x8x8xf32> to vector<8x8x8xbf16>
    "tpu.trace_start"() <{level = 10 : i32, message = "bqk,bkd->bqd"}> : () -> ()
    %cst_8 = arith.constant dense<0.000000e+00> : vector<8x8x32xf32>
    %76 = tpu.matmul %75, %63, %cst_8 {dimension_numbers = #tpu.dot_dimension_numbers<[2], [1], [1], [2], [0, 0, 0, 1, 1, 2], [0], [0]>} : vector<8x8x8xbf16>, vector<8x8x32xbf16>, vector<8x8x32xf32> -> vector<8x8x32xf32>
    "tpu.trace_stop"() : () -> ()
    %77 = vector.extract_strided_slice %76 {offsets = [0, 0, 0], sizes = [4, 8, 32], strides = [1, 1, 1]} : vector<8x8x32xf32> to vector<4x8x32xf32>
    %78 = arith.truncf %77 : vector<4x8x32xf32> to vector<4x8x32xbf16>
    %c0_9 = arith.constant 0 : index
    %c0_10 = arith.constant 0 : index
    %c0_11 = arith.constant 0 : index
    %79 = vector.load %arg3[%c0_9, %c0_10, %c0_11] : memref<4x32x128xbf16, #tpu.memory_space<vmem>>, vector<4x32x128xbf16>
    "tpu.trace_start"() <{level = 10 : i32, message = "hqd,hde->hqe"}> : () -> ()
    %cst_12 = arith.constant dense<0.000000e+00> : vector<4x8x128xf32>
    %80 = tpu.matmul %78, %79, %cst_12 {dimension_numbers = #tpu.dot_dimension_numbers<[2], [1], [1], [2], [0, 0, 0, 1, 1, 2], [0], [0]>} : vector<4x8x32xbf16>, vector<4x32x128xbf16>, vector<4x8x128xf32> -> vector<4x8x128xf32>
    "tpu.trace_stop"() : () -> ()
    %81 = vector.extract_strided_slice %80 {offsets = [0, 0, 0], sizes = [1, 8, 128], strides = [1, 1, 1]} : vector<4x8x128xf32> to vector<1x8x128xf32>
    %82 = vector.shape_cast %81 : vector<1x8x128xf32> to vector<8x128xf32>
    %83 = vector.extract_strided_slice %80 {offsets = [1, 0, 0], sizes = [1, 8, 128], strides = [1, 1, 1]} : vector<4x8x128xf32> to vector<1x8x128xf32>
    %84 = vector.shape_cast %83 : vector<1x8x128xf32> to vector<8x128xf32>
    %85 = arith.addf %82, %84 : vector<8x128xf32>
    %86 = vector.extract_strided_slice %80 {offsets = [2, 0, 0], sizes = [1, 8, 128], strides = [1, 1, 1]} : vector<4x8x128xf32> to vector<1x8x128xf32>
    %87 = vector.shape_cast %86 : vector<1x8x128xf32> to vector<8x128xf32>
    %88 = arith.addf %85, %87 : vector<8x128xf32>
    %89 = vector.extract_strided_slice %80 {offsets = [3, 0, 0], sizes = [1, 8, 128], strides = [1, 1, 1]} : vector<4x8x128xf32> to vector<1x8x128xf32>
    %90 = vector.shape_cast %89 : vector<1x8x128xf32> to vector<8x128xf32>
    %91 = arith.addf %88, %90 : vector<8x128xf32>
    %92 = vector.extract_strided_slice %76 {offsets = [4, 0, 0], sizes = [4, 8, 32], strides = [1, 1, 1]} : vector<8x8x32xf32> to vector<4x8x32xf32>
    %93 = arith.truncf %92 : vector<4x8x32xf32> to vector<4x8x32xbf16>
    %c0_13 = arith.constant 0 : index
    %c0_14 = arith.constant 0 : index
    %c0_15 = arith.constant 0 : index
    %94 = vector.load %arg3[%c0_13, %c0_14, %c0_15] : memref<4x32x128xbf16, #tpu.memory_space<vmem>>, vector<4x32x128xbf16>
    "tpu.trace_start"() <{level = 10 : i32, message = "hqd,hde->hqe"}> : () -> ()
    %cst_16 = arith.constant dense<0.000000e+00> : vector<4x8x128xf32>
    %95 = tpu.matmul %93, %94, %cst_16 {dimension_numbers = #tpu.dot_dimension_numbers<[2], [1], [1], [2], [0, 0, 0, 1, 1, 2], [0], [0]>} : vector<4x8x32xbf16>, vector<4x32x128xbf16>, vector<4x8x128xf32> -> vector<4x8x128xf32>
    "tpu.trace_stop"() : () -> ()
    %96 = vector.extract_strided_slice %95 {offsets = [0, 0, 0], sizes = [1, 8, 128], strides = [1, 1, 1]} : vector<4x8x128xf32> to vector<1x8x128xf32>
    %97 = vector.shape_cast %96 : vector<1x8x128xf32> to vector<8x128xf32>
    %98 = vector.extract_strided_slice %95 {offsets = [1, 0, 0], sizes = [1, 8, 128], strides = [1, 1, 1]} : vector<4x8x128xf32> to vector<1x8x128xf32>
    %99 = vector.shape_cast %98 : vector<1x8x128xf32> to vector<8x128xf32>
    %100 = arith.addf %97, %99 : vector<8x128xf32>
    %101 = vector.extract_strided_slice %95 {offsets = [2, 0, 0], sizes = [1, 8, 128], strides = [1, 1, 1]} : vector<4x8x128xf32> to vector<1x8x128xf32>
    %102 = vector.shape_cast %101 : vector<1x8x128xf32> to vector<8x128xf32>
    %103 = arith.addf %100, %102 : vector<8x128xf32>
    %104 = vector.extract_strided_slice %95 {offsets = [3, 0, 0], sizes = [1, 8, 128], strides = [1, 1, 1]} : vector<4x8x128xf32> to vector<1x8x128xf32>
    %105 = vector.shape_cast %104 : vector<1x8x128xf32> to vector<8x128xf32>
    %106 = arith.addf %103, %105 : vector<8x128xf32>
    %107 = tpu.concatenate %91, %106 in 0 : vector<8x128xf32>, vector<8x128xf32> -> vector<16x128xf32>
    %c0_17 = arith.constant 0 : index
    %c0_18 = arith.constant 0 : index
    %108 = vector.load %arg4[%c0_17, %c0_18] : memref<1x128xf32, #tpu.memory_space<vmem>>, vector<1x128xf32>
    %109 = vector.broadcast %108 : vector<1x128xf32> to vector<16x128xf32>
    %110 = arith.addf %107, %109 : vector<16x128xf32>
    %111 = arith.addf %0, %110 : vector<16x128xf32>
    %112 = arith.truncf %111 : vector<16x128xf32> to vector<16x128xbf16>
    %c0_19 = arith.constant 0 : index
    %c0_20 = arith.constant 0 : index
    %113 = vector.load %arg5[%c0_19, %c0_20] : memref<128x256xbf16, #tpu.memory_space<vmem>>, vector<128x256xbf16>
    %cst_21 = arith.constant dense<0.000000e+00> : vector<16x256xf32>
    %114 = tpu.matmul %112, %113, %cst_21 {dimension_numbers = #tpu.dot_dimension_numbers<[1], [0], [0], [1], [0, 0, 1, 1], [], []>} : vector<16x128xbf16>, vector<128x256xbf16>, vector<16x256xf32> -> vector<16x256xf32>
    %c0_22 = arith.constant 0 : index
    %c0_23 = arith.constant 0 : index
    %115 = vector.load %arg6[%c0_22, %c0_23] : memref<1x256xf32, #tpu.memory_space<vmem>>, vector<1x256xf32>
    %116 = vector.broadcast %115 : vector<1x256xf32> to vector<16x256xf32>
    %117 = arith.addf %114, %116 : vector<16x256xf32>
    %cst_24 = arith.constant 0.000000e+00 : f32
    %118 = vector.broadcast %cst_24 : f32 to vector<16x256xf32>
    %119 = arith.maximumf %117, %118 : vector<16x256xf32>
    %120 = arith.truncf %119 : vector<16x256xf32> to vector<16x256xbf16>
    %c0_25 = arith.constant 0 : index
    %c0_26 = arith.constant 0 : index
    %121 = vector.load %arg7[%c0_25, %c0_26] : memref<256x128xbf16, #tpu.memory_space<vmem>>, vector<256x128xbf16>
    %cst_27 = arith.constant dense<0.000000e+00> : vector<16x128xf32>
    %122 = tpu.matmul %120, %121, %cst_27 {dimension_numbers = #tpu.dot_dimension_numbers<[1], [0], [0], [1], [0, 0, 1, 1], [], []>} : vector<16x256xbf16>, vector<256x128xbf16>, vector<16x128xf32> -> vector<16x128xf32>
    %c0_28 = arith.constant 0 : index
    %c0_29 = arith.constant 0 : index
    %123 = vector.load %arg8[%c0_28, %c0_29] : memref<1x128xf32, #tpu.memory_space<vmem>>, vector<1x128xf32>
    %124 = vector.broadcast %123 : vector<1x128xf32> to vector<16x128xf32>
    %125 = arith.addf %122, %124 : vector<16x128xf32>
    %126 = arith.addf %111, %125 : vector<16x128xf32>
    %cst_30 = arith.constant dense<0.000000e+00> : vector<16xf32>
    %127 = vector.multi_reduction <add>, %126, %cst_30 [1] : vector<16x128xf32> to vector<16xf32>
    %128 = vector.shape_cast %127 : vector<16xf32> to vector<16x1xf32>
    %129 = vector.extract_strided_slice %128 {offsets = [0, 0], sizes = [8, 1], strides = [1, 1]} : vector<16x1xf32> to vector<8x1xf32>
    %130 = vector.extract_strided_slice %128 {offsets = [8, 0], sizes = [8, 1], strides = [1, 1]} : vector<16x1xf32> to vector<8x1xf32>
    %131 = arith.addf %129, %130 : vector<8x1xf32>
    %cst_31 = arith.constant 3.906250e-03 : f32
    %132 = vector.broadcast %cst_31 : f32 to vector<8x1xf32>
    %133 = arith.mulf %131, %132 : vector<8x1xf32>
    %134 = tpu.concatenate %133, %133 in 0 : vector<8x1xf32>, vector<8x1xf32> -> vector<16x1xf32>
    %135 = vector.broadcast %134 : vector<16x1xf32> to vector<16x128xf32>
    %136 = arith.subf %126, %135 : vector<16x128xf32>
    %137 = arith.mulf %136, %136 : vector<16x128xf32>
    %cst_32 = arith.constant dense<0.000000e+00> : vector<16xf32>
    %138 = vector.multi_reduction <add>, %137, %cst_32 [1] : vector<16x128xf32> to vector<16xf32>
    %139 = vector.shape_cast %138 : vector<16xf32> to vector<16x1xf32>
    %140 = vector.extract_strided_slice %139 {offsets = [0, 0], sizes = [8, 1], strides = [1, 1]} : vector<16x1xf32> to vector<8x1xf32>
    %141 = vector.extract_strided_slice %139 {offsets = [8, 0], sizes = [8, 1], strides = [1, 1]} : vector<16x1xf32> to vector<8x1xf32>
    %142 = arith.addf %140, %141 : vector<8x1xf32>
    %cst_33 = arith.constant 3.906250e-03 : f32
    %143 = vector.broadcast %cst_33 : f32 to vector<8x1xf32>
    %144 = arith.mulf %142, %143 : vector<8x1xf32>
    %cst_34 = arith.constant 9.99999997E-7 : f32
    %145 = vector.broadcast %cst_34 : f32 to vector<8x1xf32>
    %146 = arith.addf %144, %145 : vector<8x1xf32>
    %147 = math.rsqrt %146 : vector<8x1xf32>
    %148 = tpu.concatenate %147, %147 in 0 : vector<8x1xf32>, vector<8x1xf32> -> vector<16x1xf32>
    %149 = vector.broadcast %148 : vector<16x1xf32> to vector<16x128xf32>
    %150 = arith.mulf %136, %149 : vector<16x128xf32>
    %c0_35 = arith.constant 0 : index
    %c0_36 = arith.constant 0 : index
    %151 = vector.load %arg9[%c0_35, %c0_36] : memref<16x128xf32, #tpu.memory_space<vmem>>, vector<16x128xf32>
    tpu.vector_store %arg9[%c0_35, %c0_36], %150 {strides = array<i32>} : memref<16x128xf32, #tpu.memory_space<vmem>>, vector<16x128xf32>,
    return
  }
}

</mosaic_0001>

<llo_original>
// kernel: transformer_forward.1
$region0: #{transformer_forward.1}
  #allocation0 [shape = 'u32[]', space=smem, size = 0x4, offset = 0x4, fixed_abs, tag = 'smem constant byte address 0x4 - core index']
  #allocation1 [shape = 'u32[144,128]{1,0:T(1,128)}', space=vmem, size = 0x12000, scoped, tag = 'internal scratch']
  %s0 = inlined_call_operand.vmem [shape: f32[16,128], index: 0, kind: input, shape index: {}]
  %s1 = inlined_call_operand.hbm [shape: bf16[128,384], index: 1, kind: input, shape index: {}]
  %s2 = inlined_call_operand.vmem [shape: f32[1,384], index: 2, kind: input, shape index: {}]
  %s3 = inlined_call_operand.hbm [shape: bf16[4,32,128], index: 3, kind: input, shape index: {}]
  %s4 = inlined_call_operand.vmem [shape: f32[1,128], index: 4, kind: input, shape index: {}]
  %s5 = inlined_call_operand.hbm [shape: bf16[128,256], index: 5, kind: input, shape index: {}]
  %s6 = inlined_call_operand.vmem [shape: f32[1,256], index: 6, kind: input, shape index: {}]
  %s7 = inlined_call_operand.hbm [shape: bf16[256,128], index: 7, kind: input, shape index: {}]
  %s8 = inlined_call_operand.vmem [shape: f32[1,128], index: 8, kind: input, shape index: {}]
  %s9 = inlined_call_operand.vmem [shape: f32[16,128], index: 9, kind: output, shape index: {}]
  %s10 = sld [smem:[#allocation0]]
  $region62: #{transformer_forward.1} parent=0
    _
  %s12 = ssub.s32 1, %s10
  %s13 = scalar_select 0, %s12, %s10
  $region1: #{transformer_forward.1} parent=0
    #allocation2 [shape = 'u8[98304]{0}', space=vmem, size = 0x18000, scoped, tag = 'input window, operand 1, single buffered']
    #allocation3 [shape = 's32[1]{0}', space=sflag, size = 0x4, scoped, tag = 'scoped memory for transformer_forward.1']
    #allocation4 [shape = 'u8[32768]{0}', space=vmem, size = 0x8000, scoped, tag = 'input window, operand 3, single buffered']
    #allocation5 [shape = 's32[1]{0}', space=sflag, size = 0x4, scoped, tag = 'scoped memory for transformer_forward.1']
    #allocation6 [shape = 'u8[65536]{0}', space=vmem, size = 0x10000, scoped, tag = 'input window, operand 5, single buffered']
    #allocation7 [shape = 'u8[65536]{0}', space=vmem, size = 0x10000, scoped, tag = 'input window, operand 7, single buffered']
    #allocation8 [shape = 's32[1]{0}', space=sflag, size = 0x4, scoped, tag = 'scoped memory for transformer_forward.1']
    %14 = vsyncpa [#allocation3], 0
    %15 = vsyncpa [#allocation5], 0
    %16 = vsyncpa [#allocation8], 0
    // Predicated region
    $region2: #{transformer_forward.1} parent=1 // pred_check
      _
    $region3: #{transformer_forward.1} parent=1 // pred_check_branch
      %18 = sbr.rel (0) target = $region5
    $region4: #{transformer_forward.1} parent=1 // pred_region
      _
    $region5: #{transformer_forward.1} parent=1 // pred_fallthru
      _
    // Predicated region
    $region6: #{transformer_forward.1} parent=1 // pred_check
      _
    $region7: #{transformer_forward.1} parent=1 // pred_check_branch
      %20 = sbr.rel (0) target = $region9
    $region8: #{transformer_forward.1} parent=1 // pred_region
      %s22 = ssub.s32 3072, 3072
      %23 = vsyncadd [#allocation3], %s22
      %s24 = sshll.u32 [#allocation2], 4
      %s25 = int_to_ptr.vmem [resolvable:$true] %s24
      %30 = dma.hbm_to_vmem [thread:$0]  %s1, 3072, %s25, [#allocation3], 192, 192, 12
    $region9: #{transformer_forward.1} parent=1 // pred_fallthru
      _
    // Predicated region
    $region10: #{transformer_forward.1} parent=1 // pred_check
      _
    $region11: #{transformer_forward.1} parent=1 // pred_check_branch
      %32 = sbr.rel (0) target = $region13
    $region12: #{transformer_forward.1} parent=1 // pred_region
      _
    $region13: #{transformer_forward.1} parent=1 // pred_fallthru
      _
    // Predicated region
    $region14: #{transformer_forward.1} parent=1 // pred_check
      _
    $region15: #{transformer_forward.1} parent=1 // pred_check_branch
      %34 = sbr.rel (0) target = $region17
    $region16: #{transformer_forward.1} parent=1 // pred_region
      %s36 = ssub.s32 1024, 1024
      %37 = vsyncadd [#allocation5], %s36
      %s38 = sshll.u32 [#allocation4], 4
      %s39 = int_to_ptr.vmem [resolvable:$true] %s38
      %44 = dma.hbm_to_vmem [thread:$0]  %s3, 1024, %s39, [#allocation5], 64, 64, 4
    $region17: #{transformer_forward.1} parent=1 // pred_fallthru
      _
    // Predicated region
    $region18: #{transformer_forward.1} parent=1 // pred_check
      _
    $region19: #{transformer_forward.1} parent=1 // pred_check_branch
      %46 = sbr.rel (0) target = $region21
    $region20: #{transformer_forward.1} parent=1 // pred_region
      _
    $region21: #{transformer_forward.1} parent=1 // pred_fallthru
      _
    // Predicated region
    $region22: #{transformer_forward.1} parent=1 // pred_check
      _
    $region23: #{transformer_forward.1} parent=1 // pred_check_branch
      %48 = sbr.rel (0) target = $region25
    $region24: #{transformer_forward.1} parent=1 // pred_region
      %s50 = ssub.s32 2048, 2048
      %51 = vsyncadd [#allocation5], %s50
      %s52 = sshll.u32 [#allocation6], 4
      %s53 = int_to_ptr.vmem [resolvable:$true] %s52
      %58 = dma.hbm_to_vmem [thread:$0]  %s5, 2048, %s53, [#allocation5], 128, 128, 8
    $region25: #{transformer_forward.1} parent=1 // pred_fallthru
      _
    // Predicated region
    $region26: #{transformer_forward.1} parent=1 // pred_check
      _
    $region27: #{transformer_forward.1} parent=1 // pred_check_branch
      %60 = sbr.rel (0) target = $region29
    $region28: #{transformer_forward.1} parent=1 // pred_region
      _
    $region29: #{transformer_forward.1} parent=1 // pred_fallthru
      _
    // Predicated region
    $region30: #{transformer_forward.1} parent=1 // pred_check
      _
    $region31: #{transformer_forward.1} parent=1 // pred_check_branch
      %62 = sbr.rel (0) target = $region33
    $region32: #{transformer_forward.1} parent=1 // pred_region
      %s64 = ssub.s32 2048, 2048
      %65 = vsyncadd [#allocation8], %s64
      %s66 = sshll.u32 [#allocation7], 4
      %s67 = int_to_ptr.vmem [resolvable:$true] %s66
      %72 = dma.hbm_to_vmem [thread:$0]  %s7, 2048, %s67, [#allocation8], 64, 64, 4
    $region33: #{transformer_forward.1} parent=1 // pred_fallthru
      _
    // Predicated region
    $region34: #{transformer_forward.1} parent=1 // pred_check
      _
    $region35: #{transformer_forward.1} parent=1 // pred_check_branch
      %74 = sbr.rel (0) target = $region37
    $region36: #{transformer_forward.1} parent=1 // pred_region
      _
    $region37: #{transformer_forward.1} parent=1 // pred_fallthru
      _
    // Predicated region
    $region38: #{transformer_forward.1} parent=1 // pred_check
      _
    $region39: #{transformer_forward.1} parent=1 // pred_check_branch
      %76 = sbr.rel (0) target = $region41
    $region40: #{transformer_forward.1} parent=1 // pred_region
      %77 = dma.done [#allocation3], 3072
    $region41: #{transformer_forward.1} parent=1 // pred_fallthru
      _
    // Predicated region
    $region42: #{transformer_forward.1} parent=1 // pred_check
      _
    $region43: #{transformer_forward.1} parent=1 // pred_check_branch
      %79 = sbr.rel (0) target = $region45
    $region44: #{transformer_forward.1} parent=1 // pred_region
      %80 = dma.done [#allocation5], 1024
    $region45: #{transformer_forward.1} parent=1 // pred_fallthru
      _
    // Predicated region
    $region46: #{transformer_forward.1} parent=1 // pred_check
      _
    $region47: #{transformer_forward.1} parent=1 // pred_check_branch
      %82 = sbr.rel (0) target = $region49
    $region48: #{transformer_forward.1} parent=1 // pred_region
      %83 = dma.done [#allocation5], 2048
    $region49: #{transformer_forward.1} parent=1 // pred_fallthru
      _
    // Predicated region
    $region50: #{transformer_forward.1} parent=1 // pred_check
      _
    $region51: #{transformer_forward.1} parent=1 // pred_check_branch
      %85 = sbr.rel (0) target = $region53
    $region52: #{transformer_forward.1} parent=1 // pred_region
      %86 = dma.done [#allocation8], 2048
    $region53: #{transformer_forward.1} parent=1 // pred_fallthru
      _
    %v88 = vld [vmem:[%s0] sm:$0xff]
    %v89 = vld [vmem:[%s0 + $0x8] sm:$0xff]
    %v90 = vpack.c.bf16 %v89, %v88
    %v91 = vld [vmem:[#allocation2] sm:$0xff]
    %v92 = vld [vmem:[#allocation2 + $0x8] sm:$0xf]
    %v93 = vld [vmem:[#allocation2 + $0xc] sm:$0xff]
    %v94 = vld [vmem:[#allocation2 + $0x14] sm:$0xf]
    %v95 = vld [vmem:[#allocation2 + $0x18] sm:$0xff]
    %v96 = vld [vmem:[#allocation2 + $0x20] sm:$0xf]
    %v97 = vld [vmem:[#allocation2 + $0x24] sm:$0xff]
    %v98 = vld [vmem:[#allocation2 + $0x2c] sm:$0xf]
    %v99 = vld [vmem:[#allocation2 + $0x30] sm:$0xff]
    %v100 = vld [vmem:[#allocation2 + $0x38] sm:$0xf]
    %v101 = vld [vmem:[#allocation2 + $0x3c] sm:$0xff]
    %v102 = vld [vmem:[#allocation2 + $0x44] sm:$0xf]
    %v103 = vld [vmem:[#allocation2 + $0x48] sm:$0xff]
    %v104 = vld [vmem:[#allocation2 + $0x50] sm:$0xf]
    %v105 = vld [vmem:[#allocation2 + $0x54] sm:$0xff]
    %v106 = vld [vmem:[#allocation2 + $0x5c] sm:$0xf]
    %v107 = vld [vmem:[#allocation2 + $0x60] sm:$0xff]
    %v108 = vld [vmem:[#allocation2 + $0x68] sm:$0xf]
    %v109 = vld [vmem:[#allocation2 + $0x6c] sm:$0xff]
    %v110 = vld [vmem:[#allocation2 + $0x74] sm:$0xf]
    %v111 = vld [vmem:[#allocation2 + $0x78] sm:$0xff]
    %v112 = vld [vmem:[#allocation2 + $0x80] sm:$0xf]
    %v113 = vld [vmem:[#allocation2 + $0x84] sm:$0xff]
    %v114 = vld [vmem:[#allocation2 + $0x8c] sm:$0xf]
    %v115 = vld [vmem:[#allocation2 + $0x90] sm:$0xff]
    %v116 = vld [vmem:[#allocation2 + $0x98] sm:$0xf]
    %v117 = vld [vmem:[#allocation2 + $0x9c] sm:$0xff]
    %v118 = vld [vmem:[#allocation2 + $0xa4] sm:$0xf]
    %v119 = vld [vmem:[#allocation2 + $0xa8] sm:$0xff]
    %v120 = vld [vmem:[#allocation2 + $0xb0] sm:$0xf]
    %v121 = vld [vmem:[#allocation2 + $0xb4] sm:$0xff]
    %v122 = vld [vmem:[#allocation2 + $0xbc] sm:$0xf]
    %v123 = vld [vmem:[%s2] sm:$0x7]
    %v125 = vlaneseq
    %v126 = vshrl.u32 %v125, 7
    %v127 = vsub.s32 0, %v126
    %v128 = vrot.slane %v123, %v127
    %v129 = vlaneseq
    %v130 = vshrl.u32 %v129, 7
    %v131 = vsub.s32 1, %v130
    %v132 = vrot.slane %v123, %v131
    %v133 = vlaneseq
    %v134 = vshrl.u32 %v133, 7
    %v135 = vsub.s32 2, %v134
    %v136 = vrot.slane %v123, %v135
    %v172 = vunpack.c.l.b16 %v91
    %v173 = vunpack.c.h.b16 %v91
    %v174 = vunpack.c.l.b16 %v92
    %v175 = vunpack.c.l.b16 %v93
    %v176 = vunpack.c.h.b16 %v93
    %v177 = vunpack.c.l.b16 %v94
    %v178 = vunpack.c.l.b16 %v95
    %v179 = vunpack.c.h.b16 %v95
    %v180 = vunpack.c.l.b16 %v96
    %v181 = vunpack.c.l.b16 %v97
    %v182 = vunpack.c.h.b16 %v97
    %v183 = vunpack.c.l.b16 %v98
    %v184 = vunpack.c.l.b16 %v99
    %v185 = vunpack.c.h.b16 %v99
    %v186 = vunpack.c.l.b16 %v100
    %v187 = vunpack.c.l.b16 %v101
    %v188 = vunpack.c.h.b16 %v101
    %v189 = vunpack.c.l.b16 %v102
    %v190 = vunpack.c.l.b16 %v103
    %v191 = vunpack.c.h.b16 %v103
    %v192 = vunpack.c.l.b16 %v104
    %v193 = vunpack.c.l.b16 %v105
    %v194 = vunpack.c.h.b16 %v105
    %v195 = vunpack.c.l.b16 %v106
    %v196 = vunpack.c.l.b16 %v107
    %v197 = vunpack.c.h.b16 %v107
    %v198 = vunpack.c.l.b16 %v108
    %v199 = vunpack.c.l.b16 %v109
    %v200 = vunpack.c.h.b16 %v109
    %v201 = vunpack.c.l.b16 %v110
    %v202 = vunpack.c.l.b16 %v111
    %v203 = vunpack.c.h.b16 %v111
    %v204 = vunpack.c.l.b16 %v112
    %v205 = vunpack.c.l.b16 %v113
    %v206 = vunpack.c.h.b16 %v113
    %v207 = vunpack.c.l.b16 %v114
    %v208 = vunpack.c.l.b16 %v115
    %v209 = vunpack.c.h.b16 %v115
    %v210 = vunpack.c.l.b16 %v116
    %v211 = vunpack.c.l.b16 %v117
    %v212 = vunpack.c.h.b16 %v117
    %v213 = vunpack.c.l.b16 %v118
    %v214 = vunpack.c.l.b16 %v119
    %v215 = vunpack.c.h.b16 %v119
    %v216 = vunpack.c.l.b16 %v120
    %v217 = vunpack.c.l.b16 %v121
    %v218 = vunpack.c.h.b16 %v121
    %v219 = vunpack.c.l.b16 %v122
    %v220 = vpack.c.b16 %v175, %v172
    %v221 = vpack.c.b16 %v176, %v173
    %v222 = vpack.c.b16 %v177, %v174
    %v223 = vpack.c.b16 %v181, %v178
    %v224 = vpack.c.b16 %v182, %v179
    %v225 = vpack.c.b16 %v183, %v180
    %v226 = vpack.c.b16 %v187, %v184
    %v227 = vpack.c.b16 %v188, %v185
    %v228 = vpack.c.b16 %v189, %v186
    %v229 = vpack.c.b16 %v193, %v190
    %v230 = vpack.c.b16 %v194, %v191
    %v231 = vpack.c.b16 %v195, %v192
    %v232 = vpack.c.b16 %v199, %v196
    %v233 = vpack.c.b16 %v200, %v197
    %v234 = vpack.c.b16 %v201, %v198
    %v235 = vpack.c.b16 %v205, %v202
    %v236 = vpack.c.b16 %v206, %v203
    %v237 = vpack.c.b16 %v207, %v204
    %v238 = vpack.c.b16 %v211, %v208
    %v239 = vpack.c.b16 %v212, %v209
    %v240 = vpack.c.b16 %v213, %v210
    %v241 = vpack.c.b16 %v217, %v214
    %v242 = vpack.c.b16 %v218, %v215
    %v243 = vpack.c.b16 %v219, %v216
    %268 = vmatprep.subr.bf16.mxu0 %v242
    %269 = vmatpush1.bf16.msra.mxu0 %v241
    %270 = vmatprep.subr.bf16.mxu0 %v239
    %271 = vmatpush1.bf16.msra.mxu0 %v238
    %272 = vmatprep.subr.bf16.mxu0 %v236
    %273 = vmatpush1.bf16.msra.mxu0 %v235
    %274 = vmatprep.subr.bf16.mxu0 %v233
    %275 = vmatpush1.bf16.msra.mxu0 %v232
    %276 = vmatprep.subr.bf16.mxu0 %v230
    %277 = vmatpush1.bf16.msra.mxu0 %v229
    %278 = vmatprep.subr.bf16.mxu0 %v227
    %279 = vmatpush1.bf16.msra.mxu0 %v226
    %280 = vmatprep.subr.bf16.mxu0 %v224
    %281 = vmatpush1.bf16.msra.mxu0 %v223
    %282 = vmatprep.subr.bf16.mxu0 %v221
    %283 = vmatpush1.bf16.msra.mxu0 %v220
    %284 = vmatprep.subr.bf16.mxu0 0
    %285 = vmatpush2.bf16.msra.mxu0 0
    %286 = vmatprep.subr.bf16.mxu0 0
    %287 = vmatpush2.bf16.msra.mxu0 0
    %288 = vmatprep.subr.bf16.mxu0 0
    %289 = vmatpush2.bf16.msra.mxu0 0
    %290 = vmatprep.subr.bf16.mxu0 0
    %291 = vmatpush2.bf16.msra.mxu0 0
    %292 = vmatprep.subr.bf16.mxu0 0
    %293 = vmatpush2.bf16.msra.mxu0 0
    %294 = vmatprep.subr.bf16.mxu0 0
    %295 = vmatpush2.bf16.msra.mxu0 0
    %296 = vmatprep.subr.bf16.mxu0 0
    %297 = vmatpush2.bf16.msra.mxu0 0
    %298 = vmatprep.subr.bf16.mxu0 0
    %299 = vmatpush2.bf16.msra.mxu0 0
    %300 = vmatprep.mubr.bf16.mxu0 0
    %301 = vmatmul.mubr.bf16.gmra.mxu0 %v90
    %v302 = vpop.f32.mrf.mxu0
    %v303 = vadd.f32 %v128, %v302
    %v304 = vpop.f32.mrf.mxu0
    %v305 = vadd.f32 %v132, %v304
    %v306 = vpop.f32.mrf.mxu0
    %v307 = vadd.f32 %v128, %v306
    %v308 = vpop.f32.mrf.mxu0
    %v309 = vadd.f32 %v132, %v308
    %310 = vdwg.mxu0
    %311 = vmatprep.subr.bf16.mxu0 0
    %312 = vmatpush1.bf16.msra.mxu0 %v243
    %313 = vmatprep.subr.bf16.mxu0 0
    %314 = vmatpush1.bf16.msra.mxu0 %v240
    %315 = vmatprep.subr.bf16.mxu0 0
    %316 = vmatpush1.bf16.msra.mxu0 %v237
    %317 = vmatprep.subr.bf16.mxu0 0
    %318 = vmatpush1.bf16.msra.mxu0 %v234
    %319 = vmatprep.subr.bf16.mxu0 0
    %320 = vmatpush1.bf16.msra.mxu0 %v231
    %321 = vmatprep.subr.bf16.mxu0 0
    %322 = vmatpush1.bf16.msra.mxu0 %v228
    %323 = vmatprep.subr.bf16.mxu0 0
    %324 = vmatpush1.bf16.msra.mxu0 %v225
    %325 = vmatprep.subr.bf16.mxu0 0
    %326 = vmatpush1.bf16.msra.mxu0 %v222
    %327 = vmatprep.subr.bf16.mxu0 0
    %328 = vmatpush2.bf16.msra.mxu0 0
    %329 = vmatprep.subr.bf16.mxu0 0
    %330 = vmatpush2.bf16.msra.mxu0 0
    %331 = vmatprep.subr.bf16.mxu0 0
    %332 = vmatpush2.bf16.msra.mxu0 0
    %333 = vmatprep.subr.bf16.mxu0 0
    %334 = vmatpush2.bf16.msra.mxu0 0
    %335 = vmatprep.subr.bf16.mxu0 0
    %336 = vmatpush2.bf16.msra.mxu0 0
    %337 = vmatprep.subr.bf16.mxu0 0
    %338 = vmatpush2.bf16.msra.mxu0 0
    %339 = vmatprep.subr.bf16.mxu0 0
    %340 = vmatpush2.bf16.msra.mxu0 0
    %341 = vmatprep.subr.bf16.mxu0 0
    %342 = vmatpush2.bf16.msra.mxu0 0
    %343 = vmatprep.mubr.bf16.mxu0 0
    %344 = vmatmul.mubr.bf16.gmra.mxu0 %v90
    %v345 = vpop.f32.mrf.mxu0
    %v346 = vadd.f32 %v136, %v345
    %v347 = vpop.f32.mrf.mxu0
    %v348 = vpop.f32.mrf.mxu0
    %v349 = vadd.f32 %v136, %v348
    %v350 = vpop.f32.mrf.mxu0
    %351 = vdwg.mxu0
    %v352 = vpack.c.bf16 %v307, %v303
    %354 = vrot.lane.b32.xlu0 %v352, 96
    %v355 = vpop.permute.xlu0 %354
    %356 = vrot.lane.b32.xlu0 %v352, 64
    %v357 = vpop.permute.xlu0 %356
    %358 = vrot.lane.b32.xlu0 %v352, 32
    %v359 = vpop.permute.xlu0 %358
    %v360 = vrot.slane %v352, 4
    %361 = vrot.lane.b32.xlu0 %v360, 96
    %v362 = vpop.permute.xlu0 %361
    %363 = vrot.lane.b32.xlu0 %v360, 64
    %v364 = vpop.permute.xlu0 %363
    %365 = vrot.lane.b32.xlu0 %v360, 32
    %v366 = vpop.permute.xlu0 %365
    %v367 = vpack.c.bf16 %v309, %v305
    %369 = vrot.lane.b32.xlu0 %v367, 96
    %v370 = vpop.permute.xlu0 %369
    %371 = vrot.lane.b32.xlu0 %v367, 64
    %v372 = vpop.permute.xlu0 %371
    %373 = vrot.lane.b32.xlu0 %v367, 32
    %v374 = vpop.permute.xlu0 %373
    %v375 = vrot.slane %v367, 4
    %376 = vrot.lane.b32.xlu0 %v375, 96
    %v377 = vpop.permute.xlu0 %376
    %378 = vrot.lane.b32.xlu0 %v375, 64
    %v379 = vpop.permute.xlu0 %378
    %380 = vrot.lane.b32.xlu0 %v375, 32
    %v381 = vpop.permute.xlu0 %380
    %v382 = vpack.c.bf16 %v349, %v346
    %384 = vrot.lane.b32.xlu0 %v382, 96
    %v385 = vpop.permute.xlu0 %384
    %386 = vrot.lane.b32.xlu0 %v382, 64
    %v387 = vpop.permute.xlu0 %386
    %388 = vrot.lane.b32.xlu0 %v382, 32
    %v389 = vpop.permute.xlu0 %388
    %v390 = vrot.slane %v382, 4
    %391 = vrot.lane.b32.xlu0 %v390, 96
    %v392 = vpop.permute.xlu0 %391
    %393 = vrot.lane.b32.xlu0 %v390, 64
    %v394 = vpop.permute.xlu0 %393
    %395 = vrot.lane.b32.xlu0 %v390, 32
    %v396 = vpop.permute.xlu0 %395
    %vm397 = vcmask 261120
    %v399 = vsel %vm397, %v352, 0
    %v402 = vsel %vm397, %v367, 0
    %404 = vmatprep.subr.bf16.mxu0 0
    %405 = vmatpush1.bf16.xpose.msra.mxu0 0
    %406 = vmatprep.subr.bf16.mxu0 0
    %407 = vmatpush1.bf16.xpose.msra.mxu0 0
    %408 = vmatprep.subr.bf16.mxu0 0
    %409 = vmatpush1.bf16.xpose.msra.mxu0 0
    %410 = vmatprep.subr.bf16.mxu0 0
    %411 = vmatpush1.bf16.xpose.msra.mxu0 0
    %412 = vmatprep.subr.bf16.mxu0 0
    %413 = vmatpush1.bf16.xpose.msra.mxu0 0
    %414 = vmatprep.subr.bf16.mxu0 0
    %415 = vmatpush1.bf16.xpose.msra.mxu0 0
    %416 = vmatprep.subr.bf16.mxu0 0
    %417 = vmatpush1.bf16.xpose.msra.mxu0 0
    %418 = vmatprep.subr.bf16.mxu0 0
    %419 = vmatpush1.bf16.xpose.msra.mxu0 %v402
    %420 = vmatprep.subr.bf16.mxu0 0
    %421 = vmatpush2.bf16.xpose.msra.mxu0 0
    %422 = vmatprep.subr.bf16.mxu0 0
    %423 = vmatpush2.bf16.xpose.msra.mxu0 0
    %424 = vmatprep.subr.bf16.mxu0 0
    %425 = vmatpush2.bf16.xpose.msra.mxu0 0
    %426 = vmatprep.subr.bf16.mxu0 0
    %427 = vmatpush2.bf16.xpose.msra.mxu0 0
    %428 = vmatprep.subr.bf16.mxu0 0
    %429 = vmatpush2.bf16.xpose.msra.mxu0 0
    %430 = vmatprep.subr.bf16.mxu0 0
    %431 = vmatpush2.bf16.xpose.msra.mxu0 0
    %432 = vmatprep.subr.bf16.mxu0 0
    %433 = vmatpush2.bf16.xpose.msra.mxu0 0
    %434 = vmatprep.subr.bf16.mxu0 0
    %435 = vmatpush2.bf16.xpose.msra.mxu0 0
    %436 = vmatprep.mubr.bf16.mxu0 0
    %437 = vmatmul.mubr.bf16.gmra.mxu0 %v399
    %v438 = vpop.f32.mrf.mxu0
    %v439 = vadd.f32 0.0, %v438
    %v440 = vpop.f32.mrf.mxu0
    %v441 = vpop.f32.mrf.mxu0
    %v442 = vpop.f32.mrf.mxu0
    %443 = vdwg.mxu0
    %v445 = vsel %vm397, %v355, 0
    %v448 = vsel %vm397, %v370, 0
    %450 = vmatprep.subr.bf16.mxu0 0
    %451 = vmatpush1.bf16.xpose.msra.mxu0 0
    %452 = vmatprep.subr.bf16.mxu0 0
    %453 = vmatpush1.bf16.xpose.msra.mxu0 0
    %454 = vmatprep.subr.bf16.mxu0 0
    %455 = vmatpush1.bf16.xpose.msra.mxu0 0
    %456 = vmatprep.subr.bf16.mxu0 0
    %457 = vmatpush1.bf16.xpose.msra.mxu0 0
    %458 = vmatprep.subr.bf16.mxu0 0
    %459 = vmatpush1.bf16.xpose.msra.mxu0 0
    %460 = vmatprep.subr.bf16.mxu0 0
    %461 = vmatpush1.bf16.xpose.msra.mxu0 0
    %462 = vmatprep.subr.bf16.mxu0 0
    %463 = vmatpush1.bf16.xpose.msra.mxu0 0
    %464 = vmatprep.subr.bf16.mxu0 0
    %465 = vmatpush1.bf16.xpose.msra.mxu0 %v448
    %466 = vmatprep.subr.bf16.mxu0 0
    %467 = vmatpush2.bf16.xpose.msra.mxu0 0
    %468 = vmatprep.subr.bf16.mxu0 0
    %469 = vmatpush2.bf16.xpose.msra.mxu0 0
    %470 = vmatprep.subr.bf16.mxu0 0
    %471 = vmatpush2.bf16.xpose.msra.mxu0 0
    %472 = vmatprep.subr.bf16.mxu0 0
    %473 = vmatpush2.bf16.xpose.msra.mxu0 0
    %474 = vmatprep.subr.bf16.mxu0 0
    %475 = vmatpush2.bf16.xpose.msra.mxu0 0
    %476 = vmatprep.subr.bf16.mxu0 0
    %477 = vmatpush2.bf16.xpose.msra.mxu0 0
    %478 = vmatprep.subr.bf16.mxu0 0
    %479 = vmatpush2.bf16.xpose.msra.mxu0 0
    %480 = vmatprep.subr.bf16.mxu0 0
    %481 = vmatpush2.bf16.xpose.msra.mxu0 0
    %482 = vmatprep.mubr.bf16.mxu0 0
    %483 = vmatmul.mubr.bf16.gmra.mxu0 %v445
    %v484 = vpop.f32.mrf.mxu0
    %v485 = vadd.f32 0.0, %v484
    %v486 = vpop.f32.mrf.mxu0
    %v487 = vpop.f32.mrf.mxu0
    %v488 = vpop.f32.mrf.mxu0
    %489 = vdwg.mxu0
    %v491 = vsel %vm397, %v357, 0
    %v494 = vsel %vm397, %v372, 0
    %496 = vmatprep.subr.bf16.mxu0 0
    %497 = vmatpush1.bf16.xpose.msra.mxu0 0
    %498 = vmatprep.subr.bf16.mxu0 0
    %499 = vmatpush1.bf16.xpose.msra.mxu0 0
    %500 = vmatprep.subr.bf16.mxu0 0
    %501 = vmatpush1.bf16.xpose.msra.mxu0 0
    %502 = vmatprep.subr.bf16.mxu0 0
    %503 = vmatpush1.bf16.xpose.msra.mxu0 0
    %504 = vmatprep.subr.bf16.mxu0 0
    %505 = vmatpush1.bf16.xpose.msra.mxu0 0
    %506 = vmatprep.subr.bf16.mxu0 0
    %507 = vmatpush1.bf16.xpose.msra.mxu0 0
    %508 = vmatprep.subr.bf16.mxu0 0
    %509 = vmatpush1.bf16.xpose.msra.mxu0 0
    %510 = vmatprep.subr.bf16.mxu0 0
    %511 = vmatpush1.bf16.xpose.msra.mxu0 %v494
    %512 = vmatprep.subr.bf16.mxu0 0
    %513 = vmatpush2.bf16.xpose.msra.mxu0 0
    %514 = vmatprep.subr.bf16.mxu0 0
    %515 = vmatpush2.bf16.xpose.msra.mxu0 0
    %516 = vmatprep.subr.bf16.mxu0 0
    %517 = vmatpush2.bf16.xpose.msra.mxu0 0
    %518 = vmatprep.subr.bf16.mxu0 0
    %519 = vmatpush2.bf16.xpose.msra.mxu0 0
    %520 = vmatprep.subr.bf16.mxu0 0
    %521 = vmatpush2.bf16.xpose.msra.mxu0 0
    %522 = vmatprep.subr.bf16.mxu0 0
    %523 = vmatpush2.bf16.xpose.msra.mxu0 0
    %524 = vmatprep.subr.bf16.mxu0 0
    %525 = vmatpush2.bf16.xpose.msra.mxu0 0
    %526 = vmatprep.subr.bf16.mxu0 0
    %527 = vmatpush2.bf16.xpose.msra.mxu0 0
    %528 = vmatprep.mubr.bf16.mxu0 0
    %529 = vmatmul.mubr.bf16.gmra.mxu0 %v491
    %v530 = vpop.f32.mrf.mxu0
    %v531 = vadd.f32 0.0, %v530
    %v532 = vpop.f32.mrf.mxu0
    %v533 = vpop.f32.mrf.mxu0
    %v534 = vpop.f32.mrf.mxu0
    %535 = vdwg.mxu0
    %v537 = vsel %vm397, %v359, 0
    %v540 = vsel %vm397, %v374, 0
    %542 = vmatprep.subr.bf16.mxu0 0
    %543 = vmatpush1.bf16.xpose.msra.mxu0 0
    %544 = vmatprep.subr.bf16.mxu0 0
    %545 = vmatpush1.bf16.xpose.msra.mxu0 0
    %546 = vmatprep.subr.bf16.mxu0 0
    %547 = vmatpush1.bf16.xpose.msra.mxu0 0
    %548 = vmatprep.subr.bf16.mxu0 0
    %549 = vmatpush1.bf16.xpose.msra.mxu0 0
    %550 = vmatprep.subr.bf16.mxu0 0
    %551 = vmatpush1.bf16.xpose.msra.mxu0 0
    %552 = vmatprep.subr.bf16.mxu0 0
    %553 = vmatpush1.bf16.xpose.msra.mxu0 0
    %554 = vmatprep.subr.bf16.mxu0 0
    %555 = vmatpush1.bf16.xpose.msra.mxu0 0
    %556 = vmatprep.subr.bf16.mxu0 0
    %557 = vmatpush1.bf16.xpose.msra.mxu0 %v540
    %558 = vmatprep.subr.bf16.mxu0 0
    %559 = vmatpush2.bf16.xpose.msra.mxu0 0
    %560 = vmatprep.subr.bf16.mxu0 0
    %561 = vmatpush2.bf16.xpose.msra.mxu0 0
    %562 = vmatprep.subr.bf16.mxu0 0
    %563 = vmatpush2.bf16.xpose.msra.mxu0 0
    %564 = vmatprep.subr.bf16.mxu0 0
    %565 = vmatpush2.bf16.xpose.msra.mxu0 0
    %566 = vmatprep.subr.bf16.mxu0 0
    %567 = vmatpush2.bf16.xpose.msra.mxu0 0
    %568 = vmatprep.subr.bf16.mxu0 0
    %569 = vmatpush2.bf16.xpose.msra.mxu0 0
    %570 = vmatprep.subr.bf16.mxu0 0
    %571 = vmatpush2.bf16.xpose.msra.mxu0 0
    %572 = vmatprep.subr.bf16.mxu0 0
    %573 = vmatpush2.bf16.xpose.msra.mxu0 0
    %574 = vmatprep.mubr.bf16.mxu0 0
    %575 = vmatmul.mubr.bf16.gmra.mxu0 %v537
    %v576 = vpop.f32.mrf.mxu0
    %v577 = vadd.f32 0.0, %v576
    %v578 = vpop.f32.mrf.mxu0
    %v579 = vpop.f32.mrf.mxu0
    %v580 = vpop.f32.mrf.mxu0
    %581 = vdwg.mxu0
    %v583 = vsel %vm397, %v360, 0
    %v586 = vsel %vm397, %v375, 0
    %588 = vmatprep.subr.bf16.mxu0 0
    %589 = vmatpush1.bf16.xpose.msra.mxu0 0
    %590 = vmatprep.subr.bf16.mxu0 0
    %591 = vmatpush1.bf16.xpose.msra.mxu0 0
    %592 = vmatprep.subr.bf16.mxu0 0
    %593 = vmatpush1.bf16.xpose.msra.mxu0 0
    %594 = vmatprep.subr.bf16.mxu0 0
    %595 = vmatpush1.bf16.xpose.msra.mxu0 0
    %596 = vmatprep.subr.bf16.mxu0 0
    %597 = vmatpush1.bf16.xpose.msra.mxu0 0
    %598 = vmatprep.subr.bf16.mxu0 0
    %599 = vmatpush1.bf16.xpose.msra.mxu0 0
    %600 = vmatprep.subr.bf16.mxu0 0
    %601 = vmatpush1.bf16.xpose.msra.mxu0 0
    %602 = vmatprep.subr.bf16.mxu0 0
    %603 = vmatpush1.bf16.xpose.msra.mxu0 %v586
    %604 = vmatprep.subr.bf16.mxu0 0
    %605 = vmatpush2.bf16.xpose.msra.mxu0 0
    %606 = vmatprep.subr.bf16.mxu0 0
    %607 = vmatpush2.bf16.xpose.msra.mxu0 0
    %608 = vmatprep.subr.bf16.mxu0 0
    %609 = vmatpush2.bf16.xpose.msra.mxu0 0
    %610 = vmatprep.subr.bf16.mxu0 0
    %611 = vmatpush2.bf16.xpose.msra.mxu0 0
    %612 = vmatprep.subr.bf16.mxu0 0
    %613 = vmatpush2.bf16.xpose.msra.mxu0 0
    %614 = vmatprep.subr.bf16.mxu0 0
    %615 = vmatpush2.bf16.xpose.msra.mxu0 0
    %616 = vmatprep.subr.bf16.mxu0 0
    %617 = vmatpush2.bf16.xpose.msra.mxu0 0
    %618 = vmatprep.subr.bf16.mxu0 0
    %619 = vmatpush2.bf16.xpose.msra.mxu0 0
    %620 = vmatprep.mubr.bf16.mxu0 0
    %621 = vmatmul.mubr.bf16.gmra.mxu0 %v583
    %v622 = vpop.f32.mrf.mxu0
    %v623 = vadd.f32 0.0, %v622
    %v624 = vpop.f32.mrf.mxu0
    %v625 = vpop.f32.mrf.mxu0
    %v626 = vpop.f32.mrf.mxu0
    %627 = vdwg.mxu0
    %v629 = vsel %vm397, %v362, 0
    %v632 = vsel %vm397, %v377, 0
    %634 = vmatprep.subr.bf16.mxu0 0
    %635 = vmatpush1.bf16.xpose.msra.mxu0 0
    %636 = vmatprep.subr.bf16.mxu0 0
    %637 = vmatpush1.bf16.xpose.msra.mxu0 0
    %638 = vmatprep.subr.bf16.mxu0 0
    %639 = vmatpush1.bf16.xpose.msra.mxu0 0
    %640 = vmatprep.subr.bf16.mxu0 0
    %641 = vmatpush1.bf16.xpose.msra.mxu0 0
    %642 = vmatprep.subr.bf16.mxu0 0
    %643 = vmatpush1.bf16.xpose.msra.mxu0 0
    %644 = vmatprep.subr.bf16.mxu0 0
    %645 = vmatpush1.bf16.xpose.msra.mxu0 0
    %646 = vmatprep.subr.bf16.mxu0 0
    %647 = vmatpush1.bf16.xpose.msra.mxu0 0
    %648 = vmatprep.subr.bf16.mxu0 0
    %649 = vmatpush1.bf16.xpose.msra.mxu0 %v632
    %650 = vmatprep.subr.bf16.mxu0 0
    %651 = vmatpush2.bf16.xpose.msra.mxu0 0
    %652 = vmatprep.subr.bf16.mxu0 0
    %653 = vmatpush2.bf16.xpose.msra.mxu0 0
    %654 = vmatprep.subr.bf16.mxu0 0
    %655 = vmatpush2.bf16.xpose.msra.mxu0 0
    %656 = vmatprep.subr.bf16.mxu0 0
    %657 = vmatpush2.bf16.xpose.msra.mxu0 0
    %658 = vmatprep.subr.bf16.mxu0 0
    %659 = vmatpush2.bf16.xpose.msra.mxu0 0
    %660 = vmatprep.subr.bf16.mxu0 0
    %661 = vmatpush2.bf16.xpose.msra.mxu0 0
    %662 = vmatprep.subr.bf16.mxu0 0
    %663 = vmatpush2.bf16.xpose.msra.mxu0 0
    %664 = vmatprep.subr.bf16.mxu0 0
    %665 = vmatpush2.bf16.xpose.msra.mxu0 0
    %666 = vmatprep.mubr.bf16.mxu0 0
    %667 = vmatmul.mubr.bf16.gmra.mxu0 %v629
    %v668 = vpop.f32.mrf.mxu0
    %v669 = vadd.f32 0.0, %v668
    %v670 = vpop.f32.mrf.mxu0
    %v671 = vpop.f32.mrf.mxu0
    %v672 = vpop.f32.mrf.mxu0
    %673 = vdwg.mxu0
    %v675 = vsel %vm397, %v364, 0
    %v678 = vsel %vm397, %v379, 0
    %680 = vmatprep.subr.bf16.mxu0 0
    %681 = vmatpush1.bf16.xpose.msra.mxu0 0
    %682 = vmatprep.subr.bf16.mxu0 0
    %683 = vmatpush1.bf16.xpose.msra.mxu0 0
    %684 = vmatprep.subr.bf16.mxu0 0
    %685 = vmatpush1.bf16.xpose.msra.mxu0 0
    %686 = vmatprep.subr.bf16.mxu0 0
    %687 = vmatpush1.bf16.xpose.msra.mxu0 0
    %688 = vmatprep.subr.bf16.mxu0 0
    %689 = vmatpush1.bf16.xpose.msra.mxu0 0
    %690 = vmatprep.subr.bf16.mxu0 0
    %691 = vmatpush1.bf16.xpose.msra.mxu0 0
    %692 = vmatprep.subr.bf16.mxu0 0
    %693 = vmatpush1.bf16.xpose.msra.mxu0 0
    %694 = vmatprep.subr.bf16.mxu0 0
    %695 = vmatpush1.bf16.xpose.msra.mxu0 %v678
    %696 = vmatprep.subr.bf16.mxu0 0
    %697 = vmatpush2.bf16.xpose.msra.mxu0 0
    %698 = vmatprep.subr.bf16.mxu0 0
    %699 = vmatpush2.bf16.xpose.msra.mxu0 0
    %700 = vmatprep.subr.bf16.mxu0 0
    %701 = vmatpush2.bf16.xpose.msra.mxu0 0
    %702 = vmatprep.subr.bf16.mxu0 0
    %703 = vmatpush2.bf16.xpose.msra.mxu0 0
    %704 = vmatprep.subr.bf16.mxu0 0
    %705 = vmatpush2.bf16.xpose.msra.mxu0 0
    %706 = vmatprep.subr.bf16.mxu0 0
    %707 = vmatpush2.bf16.xpose.msra.mxu0 0
    %708 = vmatprep.subr.bf16.mxu0 0
    %709 = vmatpush2.bf16.xpose.msra.mxu0 0
    %710 = vmatprep.subr.bf16.mxu0 0
    %711 = vmatpush2.bf16.xpose.msra.mxu0 0
    %712 = vmatprep.mubr.bf16.mxu0 0
    %713 = vmatmul.mubr.bf16.gmra.mxu0 %v675
    %v714 = vpop.f32.mrf.mxu0
    %v715 = vadd.f32 0.0, %v714
    %v716 = vpop.f32.mrf.mxu0
    %v717 = vpop.f32.mrf.mxu0
    %v718 = vpop.f32.mrf.mxu0
    %719 = vdwg.mxu0
    %v721 = vsel %vm397, %v366, 0
    %v724 = vsel %vm397, %v381, 0
    %726 = vmatprep.subr.bf16.mxu0 0
    %727 = vmatpush1.bf16.xpose.msra.mxu0 0
    %728 = vmatprep.subr.bf16.mxu0 0
    %729 = vmatpush1.bf16.xpose.msra.mxu0 0
    %730 = vmatprep.subr.bf16.mxu0 0
    %731 = vmatpush1.bf16.xpose.msra.mxu0 0
    %732 = vmatprep.subr.bf16.mxu0 0
    %733 = vmatpush1.bf16.xpose.msra.mxu0 0
    %734 = vmatprep.subr.bf16.mxu0 0
    %735 = vmatpush1.bf16.xpose.msra.mxu0 0
    %736 = vmatprep.subr.bf16.mxu0 0
    %737 = vmatpush1.bf16.xpose.msra.mxu0 0
    %738 = vmatprep.subr.bf16.mxu0 0
    %739 = vmatpush1.bf16.xpose.msra.mxu0 0
    %740 = vmatprep.subr.bf16.mxu0 0
    %741 = vmatpush1.bf16.xpose.msra.mxu0 %v724
    %742 = vmatprep.subr.bf16.mxu0 0
    %743 = vmatpush2.bf16.xpose.msra.mxu0 0
    %744 = vmatprep.subr.bf16.mxu0 0
    %745 = vmatpush2.bf16.xpose.msra.mxu0 0
    %746 = vmatprep.subr.bf16.mxu0 0
    %747 = vmatpush2.bf16.xpose.msra.mxu0 0
    %748 = vmatprep.subr.bf16.mxu0 0
    %749 = vmatpush2.bf16.xpose.msra.mxu0 0
    %750 = vmatprep.subr.bf16.mxu0 0
    %751 = vmatpush2.bf16.xpose.msra.mxu0 0
    %752 = vmatprep.subr.bf16.mxu0 0
    %753 = vmatpush2.bf16.xpose.msra.mxu0 0
    %754 = vmatprep.subr.bf16.mxu0 0
    %755 = vmatpush2.bf16.xpose.msra.mxu0 0
    %756 = vmatprep.subr.bf16.mxu0 0
    %757 = vmatpush2.bf16.xpose.msra.mxu0 0
    %758 = vmatprep.mubr.bf16.mxu0 0
    %759 = vmatmul.mubr.bf16.gmra.mxu0 %v721
    %v760 = vpop.f32.mrf.mxu0
    %v761 = vadd.f32 0.0, %v760
    %v762 = vpop.f32.mrf.mxu0
    %v763 = vpop.f32.mrf.mxu0
    %v764 = vpop.f32.mrf.mxu0
    %765 = vdwg.mxu0
    %vm766 = vcmask 64512
    %v767 = vsel %vm766, %v439, -inf
    %768 = vmax.xlane.f32.xlu0 %v767
    %v769 = vpop.xlane.xlu0 %768
    %v770 = vsel %vm766, %v485, -inf
    %771 = vmax.xlane.f32.xlu0 %v770
    %v772 = vpop.xlane.xlu0 %771
    %v773 = vsel %vm766, %v531, -inf
    %774 = vmax.xlane.f32.xlu0 %v773
    %v775 = vpop.xlane.xlu0 %774
    %v776 = vsel %vm766, %v577, -inf
    %777 = vmax.xlane.f32.xlu0 %v776
    %v778 = vpop.xlane.xlu0 %777
    %v779 = vsel %vm766, %v623, -inf
    %780 = vmax.xlane.f32.xlu0 %v779
    %v781 = vpop.xlane.xlu0 %780
    %v782 = vsel %vm766, %v669, -inf
    %783 = vmax.xlane.f32.xlu0 %v782
    %v784 = vpop.xlane.xlu0 %783
    %v785 = vsel %vm766, %v715, -inf
    %786 = vmax.xlane.f32.xlu0 %v785
    %v787 = vpop.xlane.xlu0 %786
    %v788 = vsel %vm766, %v761, -inf
    %789 = vmax.xlane.f32.xlu0 %v788
    %v790 = vpop.xlane.xlu0 %789
    %v791 = vsub.f32 %v439, %v769
    %v792 = vsub.f32 %v485, %v772
    %v793 = vsub.f32 %v531, %v775
    %v794 = vsub.f32 %v577, %v778
    %v795 = vsub.f32 %v623, %v781
    %v796 = vsub.f32 %v669, %v784
    %v797 = vsub.f32 %v715, %v787
    %v798 = vsub.f32 %v761, %v790
    %v799 = vmul.f32 %v791, 1.442695
    %v800 = vpow.pop %v799
    %v801 = vmul.f32 %v792, 1.442695
    %v802 = vpow.pop %v801
    %v803 = vmul.f32 %v793, 1.442695
    %v804 = vpow.pop %v803
    %v805 = vmul.f32 %v794, 1.442695
    %v806 = vpow.pop %v805
    %v807 = vmul.f32 %v795, 1.442695
    %v808 = vpow.pop %v807
    %v809 = vmul.f32 %v796, 1.442695
    %v810 = vpow.pop %v809
    %v811 = vmul.f32 %v797, 1.442695
    %v812 = vpow.pop %v811
    %v813 = vmul.f32 %v798, 1.442695
    %v814 = vpow.pop %v813
    %v815 = vsel %vm766, %v800, 0.0
    %816 = vadd.xlane.f32.xlu0 %v815
    %v817 = vpop.xlane.xlu0 %816
    %v818 = vsel %vm766, %v802, 0.0
    %819 = vadd.xlane.f32.xlu0 %v818
    %v820 = vpop.xlane.xlu0 %819
    %v821 = vsel %vm766, %v804, 0.0
    %822 = vadd.xlane.f32.xlu0 %v821
    %v823 = vpop.xlane.xlu0 %822
    %v824 = vsel %vm766, %v806, 0.0
    %825 = vadd.xlane.f32.xlu0 %v824
    %v826 = vpop.xlane.xlu0 %825
    %v827 = vsel %vm766, %v808, 0.0
    %828 = vadd.xlane.f32.xlu0 %v827
    %v829 = vpop.xlane.xlu0 %828
    %v830 = vsel %vm766, %v810, 0.0
    %831 = vadd.xlane.f32.xlu0 %v830
    %v832 = vpop.xlane.xlu0 %831
    %v833 = vsel %vm766, %v812, 0.0
    %834 = vadd.xlane.f32.xlu0 %v833
    %v835 = vpop.xlane.xlu0 %834
    %v836 = vsel %vm766, %v814, 0.0
    %837 = vadd.xlane.f32.xlu0 %v836
    %v838 = vpop.xlane.xlu0 %837
    %v839 = vrcp.pop %v817
    %v840 = vrcp.pop %v820
    %v841 = vrcp.pop %v823
    %v842 = vrcp.pop %v826
    %v843 = vrcp.pop %v829
    %v844 = vrcp.pop %v832
    %v845 = vrcp.pop %v835
    %v846 = vrcp.pop %v838
    %v847 = vmul.f32 %v800, %v839
    %v848 = vmul.f32 %v802, %v840
    %v849 = vmul.f32 %v804, %v841
    %v850 = vmul.f32 %v806, %v842
    %v851 = vmul.f32 %v808, %v843
    %v852 = vmul.f32 %v810, %v844
    %v853 = vmul.f32 %v812, %v845
    %v854 = vmul.f32 %v814, %v846
    %v855 = vpack.c.bf16 %v847, %v847
    %v856 = vpack.c.bf16 %v848, %v848
    %v857 = vpack.c.bf16 %v849, %v849
    %v858 = vpack.c.bf16 %v850, %v850
    %v859 = vpack.c.bf16 %v851, %v851
    %v860 = vpack.c.bf16 %v852, %v852
    %v861 = vpack.c.bf16 %v853, %v853
    %v862 = vpack.c.bf16 %v854, %v854
    %v864 = vsel %vm766, %v855, 0
    %vm866 = vcmask 1043456
    %v868 = vsel %vm866, %v382, 0
    %870 = vmatprep.subr.bf16.mxu0 0
    %871 = vmatpush1.bf16.msra.mxu0 0
    %872 = vmatprep.subr.bf16.mxu0 0
    %873 = vmatpush1.bf16.msra.mxu0 0
    %874 = vmatprep.subr.bf16.mxu0 0
    %875 = vmatpush1.bf16.msra.mxu0 0
    %876 = vmatprep.subr.bf16.mxu0 0
    %877 = vmatpush1.bf16.msra.mxu0 0
    %878 = vmatprep.subr.bf16.mxu0 0
    %879 = vmatpush1.bf16.msra.mxu0 0
    %880 = vmatprep.subr.bf16.mxu0 0
    %881 = vmatpush1.bf16.msra.mxu0 0
    %882 = vmatprep.subr.bf16.mxu0 0
    %883 = vmatpush1.bf16.msra.mxu0 0
    %884 = vmatprep.subr.bf16.mxu0 0
    %885 = vmatpush1.bf16.msra.mxu0 %v868
    %886 = vmatprep.subr.bf16.mxu0 0
    %887 = vmatpush2.bf16.msra.mxu0 0
    %888 = vmatprep.subr.bf16.mxu0 0
    %889 = vmatpush2.bf16.msra.mxu0 0
    %890 = vmatprep.subr.bf16.mxu0 0
    %891 = vmatpush2.bf16.msra.mxu0 0
    %892 = vmatprep.subr.bf16.mxu0 0
    %893 = vmatpush2.bf16.msra.mxu0 0
    %894 = vmatprep.subr.bf16.mxu0 0
    %895 = vmatpush2.bf16.msra.mxu0 0
    %896 = vmatprep.subr.bf16.mxu0 0
    %897 = vmatpush2.bf16.msra.mxu0 0
    %898 = vmatprep.subr.bf16.mxu0 0
    %899 = vmatpush2.bf16.msra.mxu0 0
    %900 = vmatprep.subr.bf16.mxu0 0
    %901 = vmatpush2.bf16.msra.mxu0 0
    %902 = vmatprep.mubr.bf16.mxu0 0
    %903 = vmatmul.mubr.bf16.gmra.mxu0 %v864
    %v904 = vpop.f32.mrf.mxu0
    %v905 = vadd.f32 0.0, %v904
    %v906 = vpop.f32.mrf.mxu0
    %v907 = vpop.f32.mrf.mxu0
    %v908 = vpop.f32.mrf.mxu0
    %909 = vdwg.mxu0
    %v911 = vsel %vm766, %v856, 0
    %v914 = vsel %vm866, %v385, 0
    %916 = vmatprep.subr.bf16.mxu0 0
    %917 = vmatpush1.bf16.msra.mxu0 0
    %918 = vmatprep.subr.bf16.mxu0 0
    %919 = vmatpush1.bf16.msra.mxu0 0
    %920 = vmatprep.subr.bf16.mxu0 0
    %921 = vmatpush1.bf16.msra.mxu0 0
    %922 = vmatprep.subr.bf16.mxu0 0
    %923 = vmatpush1.bf16.msra.mxu0 0
    %924 = vmatprep.subr.bf16.mxu0 0
    %925 = vmatpush1.bf16.msra.mxu0 0
    %926 = vmatprep.subr.bf16.mxu0 0
    %927 = vmatpush1.bf16.msra.mxu0 0
    %928 = vmatprep.subr.bf16.mxu0 0
    %929 = vmatpush1.bf16.msra.mxu0 0
    %930 = vmatprep.subr.bf16.mxu0 0
    %931 = vmatpush1.bf16.msra.mxu0 %v914
    %932 = vmatprep.subr.bf16.mxu0 0
    %933 = vmatpush2.bf16.msra.mxu0 0
    %934 = vmatprep.subr.bf16.mxu0 0
    %935 = vmatpush2.bf16.msra.mxu0 0
    %936 = vmatprep.subr.bf16.mxu0 0
    %937 = vmatpush2.bf16.msra.mxu0 0
    %938 = vmatprep.subr.bf16.mxu0 0
    %939 = vmatpush2.bf16.msra.mxu0 0
    %940 = vmatprep.subr.bf16.mxu0 0
    %941 = vmatpush2.bf16.msra.mxu0 0
    %942 = vmatprep.subr.bf16.mxu0 0
    %943 = vmatpush2.bf16.msra.mxu0 0
    %944 = vmatprep.subr.bf16.mxu0 0
    %945 = vmatpush2.bf16.msra.mxu0 0
    %946 = vmatprep.subr.bf16.mxu0 0
    %947 = vmatpush2.bf16.msra.mxu0 0
    %948 = vmatprep.mubr.bf16.mxu0 0
    %949 = vmatmul.mubr.bf16.gmra.mxu0 %v911
    %v950 = vpop.f32.mrf.mxu0
    %v951 = vadd.f32 0.0, %v950
    %v952 = vpop.f32.mrf.mxu0
    %v953 = vpop.f32.mrf.mxu0
    %v954 = vpop.f32.mrf.mxu0
    %955 = vdwg.mxu0
    %v957 = vsel %vm766, %v857, 0
    %v960 = vsel %vm866, %v387, 0
    %962 = vmatprep.subr.bf16.mxu0 0
    %963 = vmatpush1.bf16.msra.mxu0 0
    %964 = vmatprep.subr.bf16.mxu0 0
    %965 = vmatpush1.bf16.msra.mxu0 0
    %966 = vmatprep.subr.bf16.mxu0 0
    %967 = vmatpush1.bf16.msra.mxu0 0
    %968 = vmatprep.subr.bf16.mxu0 0
    %969 = vmatpush1.bf16.msra.mxu0 0
    %970 = vmatprep.subr.bf16.mxu0 0
    %971 = vmatpush1.bf16.msra.mxu0 0
    %972 = vmatprep.subr.bf16.mxu0 0
    %973 = vmatpush1.bf16.msra.mxu0 0
    %974 = vmatprep.subr.bf16.mxu0 0
    %975 = vmatpush1.bf16.msra.mxu0 0
    %976 = vmatprep.subr.bf16.mxu0 0
    %977 = vmatpush1.bf16.msra.mxu0 %v960
    %978 = vmatprep.subr.bf16.mxu0 0
    %979 = vmatpush2.bf16.msra.mxu0 0
    %980 = vmatprep.subr.bf16.mxu0 0
    %981 = vmatpush2.bf16.msra.mxu0 0
    %982 = vmatprep.subr.bf16.mxu0 0
    %983 = vmatpush2.bf16.msra.mxu0 0
    %984 = vmatprep.subr.bf16.mxu0 0
    %985 = vmatpush2.bf16.msra.mxu0 0
    %986 = vmatprep.subr.bf16.mxu0 0
    %987 = vmatpush2.bf16.msra.mxu0 0
    %988 = vmatprep.subr.bf16.mxu0 0
    %989 = vmatpush2.bf16.msra.mxu0 0
    %990 = vmatprep.subr.bf16.mxu0 0
    %991 = vmatpush2.bf16.msra.mxu0 0
    %992 = vmatprep.subr.bf16.mxu0 0
    %993 = vmatpush2.bf16.msra.mxu0 0
    %994 = vmatprep.mubr.bf16.mxu0 0
    %995 = vmatmul.mubr.bf16.gmra.mxu0 %v957
    %v996 = vpop.f32.mrf.mxu0
    %v997 = vadd.f32 0.0, %v996
    %v998 = vpop.f32.mrf.mxu0
    %v999 = vpop.f32.mrf.mxu0
    %v1000 = vpop.f32.mrf.mxu0
    %1001 = vdwg.mxu0
    %v1003 = vsel %vm766, %v858, 0
    %v1006 = vsel %vm866, %v389, 0
    %1008 = vmatprep.subr.bf16.mxu0 0
    %1009 = vmatpush1.bf16.msra.mxu0 0
    %1010 = vmatprep.subr.bf16.mxu0 0
    %1011 = vmatpush1.bf16.msra.mxu0 0
    %1012 = vmatprep.subr.bf16.mxu0 0
    %1013 = vmatpush1.bf16.msra.mxu0 0
    %1014 = vmatprep.subr.bf16.mxu0 0
    %1015 = vmatpush1.bf16.msra.mxu0 0
    %1016 = vmatprep.subr.bf16.mxu0 0
    %1017 = vmatpush1.bf16.msra.mxu0 0
    %1018 = vmatprep.subr.bf16.mxu0 0
    %1019 = vmatpush1.bf16.msra.mxu0 0
    %1020 = vmatprep.subr.bf16.mxu0 0
    %1021 = vmatpush1.bf16.msra.mxu0 0
    %1022 = vmatprep.subr.bf16.mxu0 0
    %1023 = vmatpush1.bf16.msra.mxu0 %v1006
    %1024 = vmatprep.subr.bf16.mxu0 0
    %1025 = vmatpush2.bf16.msra.mxu0 0
    %1026 = vmatprep.subr.bf16.mxu0 0
    %1027 = vmatpush2.bf16.msra.mxu0 0
    %1028 = vmatprep.subr.bf16.mxu0 0
    %1029 = vmatpush2.bf16.msra.mxu0 0
    %1030 = vmatprep.subr.bf16.mxu0 0
    %1031 = vmatpush2.bf16.msra.mxu0 0
    %1032 = vmatprep.subr.bf16.mxu0 0
    %1033 = vmatpush2.bf16.msra.mxu0 0
    %1034 = vmatprep.subr.bf16.mxu0 0
    %1035 = vmatpush2.bf16.msra.mxu0 0
    %1036 = vmatprep.subr.bf16.mxu0 0
    %1037 = vmatpush2.bf16.msra.mxu0 0
    %1038 = vmatprep.subr.bf16.mxu0 0
    %1039 = vmatpush2.bf16.msra.mxu0 0
    %1040 = vmatprep.mubr.bf16.mxu0 0
    %1041 = vmatmul.mubr.bf16.gmra.mxu0 %v1003
    %v1042 = vpop.f32.mrf.mxu0
    %v1043 = vadd.f32 0.0, %v1042
    %v1044 = vpop.f32.mrf.mxu0
    %v1045 = vpop.f32.mrf.mxu0
    %v1046 = vpop.f32.mrf.mxu0
    %1047 = vdwg.mxu0
    %v1049 = vsel %vm766, %v859, 0
    %v1052 = vsel %vm866, %v390, 0
    %1054 = vmatprep.subr.bf16.mxu0 0
    %1055 = vmatpush1.bf16.msra.mxu0 0
    %1056 = vmatprep.subr.bf16.mxu0 0
    %1057 = vmatpush1.bf16.msra.mxu0 0
    %1058 = vmatprep.subr.bf16.mxu0 0
    %1059 = vmatpush1.bf16.msra.mxu0 0
    %1060 = vmatprep.subr.bf16.mxu0 0
    %1061 = vmatpush1.bf16.msra.mxu0 0
    %1062 = vmatprep.subr.bf16.mxu0 0
    %1063 = vmatpush1.bf16.msra.mxu0 0
    %1064 = vmatprep.subr.bf16.mxu0 0
    %1065 = vmatpush1.bf16.msra.mxu0 0
    %1066 = vmatprep.subr.bf16.mxu0 0
    %1067 = vmatpush1.bf16.msra.mxu0 0
    %1068 = vmatprep.subr.bf16.mxu0 0
    %1069 = vmatpush1.bf16.msra.mxu0 %v1052
    %1070 = vmatprep.subr.bf16.mxu0 0
    %1071 = vmatpush2.bf16.msra.mxu0 0
    %1072 = vmatprep.subr.bf16.mxu0 0
    %1073 = vmatpush2.bf16.msra.mxu0 0
    %1074 = vmatprep.subr.bf16.mxu0 0
    %1075 = vmatpush2.bf16.msra.mxu0 0
    %1076 = vmatprep.subr.bf16.mxu0 0
    %1077 = vmatpush2.bf16.msra.mxu0 0
    %1078 = vmatprep.subr.bf16.mxu0 0
    %1079 = vmatpush2.bf16.msra.mxu0 0
    %1080 = vmatprep.subr.bf16.mxu0 0
    %1081 = vmatpush2.bf16.msra.mxu0 0
    %1082 = vmatprep.subr.bf16.mxu0 0
    %1083 = vmatpush2.bf16.msra.mxu0 0
    %1084 = vmatprep.subr.bf16.mxu0 0
    %1085 = vmatpush2.bf16.msra.mxu0 0
    %1086 = vmatprep.mubr.bf16.mxu0 0
    %1087 = vmatmul.mubr.bf16.gmra.mxu0 %v1049
    %v1088 = vpop.f32.mrf.mxu0
    %v1089 = vadd.f32 0.0, %v1088
    %v1090 = vpop.f32.mrf.mxu0
    %v1091 = vpop.f32.mrf.mxu0
    %v1092 = vpop.f32.mrf.mxu0
    %1093 = vdwg.mxu0
    %v1095 = vsel %vm766, %v860, 0
    %v1098 = vsel %vm866, %v392, 0
    %1100 = vmatprep.subr.bf16.mxu0 0
    %1101 = vmatpush1.bf16.msra.mxu0 0
    %1102 = vmatprep.subr.bf16.mxu0 0
    %1103 = vmatpush1.bf16.msra.mxu0 0
    %1104 = vmatprep.subr.bf16.mxu0 0
    %1105 = vmatpush1.bf16.msra.mxu0 0
    %1106 = vmatprep.subr.bf16.mxu0 0
    %1107 = vmatpush1.bf16.msra.mxu0 0
    %1108 = vmatprep.subr.bf16.mxu0 0
    %1109 = vmatpush1.bf16.msra.mxu0 0
    %1110 = vmatprep.subr.bf16.mxu0 0
    %1111 = vmatpush1.bf16.msra.mxu0 0
    %1112 = vmatprep.subr.bf16.mxu0 0
    %1113 = vmatpush1.bf16.msra.mxu0 0
    %1114 = vmatprep.subr.bf16.mxu0 0
    %1115 = vmatpush1.bf16.msra.mxu0 %v1098
    %1116 = vmatprep.subr.bf16.mxu0 0
    %1117 = vmatpush2.bf16.msra.mxu0 0
    %1118 = vmatprep.subr.bf16.mxu0 0
    %1119 = vmatpush2.bf16.msra.mxu0 0
    %1120 = vmatprep.subr.bf16.mxu0 0
    %1121 = vmatpush2.bf16.msra.mxu0 0
    %1122 = vmatprep.subr.bf16.mxu0 0
    %1123 = vmatpush2.bf16.msra.mxu0 0
    %1124 = vmatprep.subr.bf16.mxu0 0
    %1125 = vmatpush2.bf16.msra.mxu0 0
    %1126 = vmatprep.subr.bf16.mxu0 0
    %1127 = vmatpush2.bf16.msra.mxu0 0
    %1128 = vmatprep.subr.bf16.mxu0 0
    %1129 = vmatpush2.bf16.msra.mxu0 0
    %1130 = vmatprep.subr.bf16.mxu0 0
    %1131 = vmatpush2.bf16.msra.mxu0 0
    %1132 = vmatprep.mubr.bf16.mxu0 0
    %1133 = vmatmul.mubr.bf16.gmra.mxu0 %v1095
    %v1134 = vpop.f32.mrf.mxu0
    %v1135 = vadd.f32 0.0, %v1134
    %v1136 = vpop.f32.mrf.mxu0
    %v1137 = vpop.f32.mrf.mxu0
    %v1138 = vpop.f32.mrf.mxu0
    %1139 = vdwg.mxu0
    %v1141 = vsel %vm766, %v861, 0
    %v1144 = vsel %vm866, %v394, 0
    %1146 = vmatprep.subr.bf16.mxu0 0
    %1147 = vmatpush1.bf16.msra.mxu0 0
    %1148 = vmatprep.subr.bf16.mxu0 0
    %1149 = vmatpush1.bf16.msra.mxu0 0
    %1150 = vmatprep.subr.bf16.mxu0 0
    %1151 = vmatpush1.bf16.msra.mxu0 0
    %1152 = vmatprep.subr.bf16.mxu0 0
    %1153 = vmatpush1.bf16.msra.mxu0 0
    %1154 = vmatprep.subr.bf16.mxu0 0
    %1155 = vmatpush1.bf16.msra.mxu0 0
    %1156 = vmatprep.subr.bf16.mxu0 0
    %1157 = vmatpush1.bf16.msra.mxu0 0
    %1158 = vmatprep.subr.bf16.mxu0 0
    %1159 = vmatpush1.bf16.msra.mxu0 0
    %1160 = vmatprep.subr.bf16.mxu0 0
    %1161 = vmatpush1.bf16.msra.mxu0 %v1144
    %1162 = vmatprep.subr.bf16.mxu0 0
    %1163 = vmatpush2.bf16.msra.mxu0 0
    %1164 = vmatprep.subr.bf16.mxu0 0
    %1165 = vmatpush2.bf16.msra.mxu0 0
    %1166 = vmatprep.subr.bf16.mxu0 0
    %1167 = vmatpush2.bf16.msra.mxu0 0
    %1168 = vmatprep.subr.bf16.mxu0 0
    %1169 = vmatpush2.bf16.msra.mxu0 0
    %1170 = vmatprep.subr.bf16.mxu0 0
    %1171 = vmatpush2.bf16.msra.mxu0 0
    %1172 = vmatprep.subr.bf16.mxu0 0
    %1173 = vmatpush2.bf16.msra.mxu0 0
    %1174 = vmatprep.subr.bf16.mxu0 0
    %1175 = vmatpush2.bf16.msra.mxu0 0
    %1176 = vmatprep.subr.bf16.mxu0 0
    %1177 = vmatpush2.bf16.msra.mxu0 0
    %1178 = vmatprep.mubr.bf16.mxu0 0
    %1179 = vmatmul.mubr.bf16.gmra.mxu0 %v1141
    %v1180 = vpop.f32.mrf.mxu0
    %v1181 = vadd.f32 0.0, %v1180
    %v1182 = vpop.f32.mrf.mxu0
    %v1183 = vpop.f32.mrf.mxu0
    %v1184 = vpop.f32.mrf.mxu0
    %1185 = vdwg.mxu0
    %v1187 = vsel %vm766, %v862, 0
    %v1190 = vsel %vm866, %v396, 0
    %1192 = vmatprep.subr.bf16.mxu0 0
    %1193 = vmatpush1.bf16.msra.mxu0 0
    %1194 = vmatprep.subr.bf16.mxu0 0
    %1195 = vmatpush1.bf16.msra.mxu0 0
    %1196 = vmatprep.subr.bf16.mxu0 0
    %1197 = vmatpush1.bf16.msra.mxu0 0
    %1198 = vmatprep.subr.bf16.mxu0 0
    %1199 = vmatpush1.bf16.msra.mxu0 0
    %1200 = vmatprep.subr.bf16.mxu0 0
    %1201 = vmatpush1.bf16.msra.mxu0 0
    %1202 = vmatprep.subr.bf16.mxu0 0
    %1203 = vmatpush1.bf16.msra.mxu0 0
    %1204 = vmatprep.subr.bf16.mxu0 0
    %1205 = vmatpush1.bf16.msra.mxu0 0
    %1206 = vmatprep.subr.bf16.mxu0 0
    %1207 = vmatpush1.bf16.msra.mxu0 %v1190
    %1208 = vmatprep.subr.bf16.mxu0 0
    %1209 = vmatpush2.bf16.msra.mxu0 0
    %1210 = vmatprep.subr.bf16.mxu0 0
    %1211 = vmatpush2.bf16.msra.mxu0 0
    %1212 = vmatprep.subr.bf16.mxu0 0
    %1213 = vmatpush2.bf16.msra.mxu0 0
    %1214 = vmatprep.subr.bf16.mxu0 0
    %1215 = vmatpush2.bf16.msra.mxu0 0
    %1216 = vmatprep.subr.bf16.mxu0 0
    %1217 = vmatpush2.bf16.msra.mxu0 0
    %1218 = vmatprep.subr.bf16.mxu0 0
    %1219 = vmatpush2.bf16.msra.mxu0 0
    %1220 = vmatprep.subr.bf16.mxu0 0
    %1221 = vmatpush2.bf16.msra.mxu0 0
    %1222 = vmatprep.subr.bf16.mxu0 0
    %1223 = vmatpush2.bf16.msra.mxu0 0
    %1224 = vmatprep.mubr.bf16.mxu0 0
    %1225 = vmatmul.mubr.bf16.gmra.mxu0 %v1187
    %v1226 = vpop.f32.mrf.mxu0
    %v1227 = vadd.f32 0.0, %v1226
    %v1228 = vpop.f32.mrf.mxu0
    %v1229 = vpop.f32.mrf.mxu0
    %v1230 = vpop.f32.mrf.mxu0
    %1231 = vdwg.mxu0
    %v1232 = vpack.c.bf16 %v905, %v905
    %v1233 = vpack.c.bf16 %v951, %v951
    %v1234 = vpack.c.bf16 %v997, %v997
    %v1235 = vpack.c.bf16 %v1043, %v1043
    %v1236 = vld [vmem:[#allocation4] sm:$0xf]
    %v1237 = vld [vmem:[#allocation4 + $0x4] sm:$0xf]
    %v1238 = vld [vmem:[#allocation4 + $0x8] sm:$0xf]
    %v1239 = vld [vmem:[#allocation4 + $0xc] sm:$0xf]
    %v1240 = vld [vmem:[#allocation4 + $0x10] sm:$0xf]
    %v1241 = vld [vmem:[#allocation4 + $0x14] sm:$0xf]
    %v1242 = vld [vmem:[#allocation4 + $0x18] sm:$0xf]
    %v1243 = vld [vmem:[#allocation4 + $0x1c] sm:$0xf]
    %v1244 = vld [vmem:[#allocation4 + $0x20] sm:$0xf]
    %v1245 = vld [vmem:[#allocation4 + $0x24] sm:$0xf]
    %v1246 = vld [vmem:[#allocation4 + $0x28] sm:$0xf]
    %v1247 = vld [vmem:[#allocation4 + $0x2c] sm:$0xf]
    %v1248 = vld [vmem:[#allocation4 + $0x30] sm:$0xf]
    %v1249 = vld [vmem:[#allocation4 + $0x34] sm:$0xf]
    %v1250 = vld [vmem:[#allocation4 + $0x38] sm:$0xf]
    %v1251 = vld [vmem:[#allocation4 + $0x3c] sm:$0xf]
    %v1256 = vunpack.c.l.b16 %v1236
    %v1257 = vunpack.c.l.b16 %v1237
    %v1258 = vunpack.c.l.b16 %v1238
    %v1259 = vunpack.c.l.b16 %v1239
    %v1260 = vpack.c.b16 %v1257, %v1256
    %v1261 = vpack.c.b16 %v1259, %v1258
    %v1265 = vsel %vm397, %v1232, 0
    %1267 = vmatprep.subr.bf16.mxu0 0
    %1268 = vmatpush1.bf16.msra.mxu0 0
    %1269 = vmatprep.subr.bf16.mxu0 0
    %1270 = vmatpush1.bf16.msra.mxu0 0
    %1271 = vmatprep.subr.bf16.mxu0 0
    %1272 = vmatpush1.bf16.msra.mxu0 0
    %1273 = vmatprep.subr.bf16.mxu0 0
    %1274 = vmatpush1.bf16.msra.mxu0 0
    %1275 = vmatprep.subr.bf16.mxu0 0
    %1276 = vmatpush1.bf16.msra.mxu0 0
    %1277 = vmatprep.subr.bf16.mxu0 0
    %1278 = vmatpush1.bf16.msra.mxu0 0
    %1279 = vmatprep.subr.bf16.mxu0 0
    %1280 = vmatpush1.bf16.msra.mxu0 %v1261
    %1281 = vmatprep.subr.bf16.mxu0 0
    %1282 = vmatpush1.bf16.msra.mxu0 %v1260
    %1283 = vmatprep.subr.bf16.mxu0 0
    %1284 = vmatpush2.bf16.msra.mxu0 0
    %1285 = vmatprep.subr.bf16.mxu0 0
    %1286 = vmatpush2.bf16.msra.mxu0 0
    %1287 = vmatprep.subr.bf16.mxu0 0
    %1288 = vmatpush2.bf16.msra.mxu0 0
    %1289 = vmatprep.subr.bf16.mxu0 0
    %1290 = vmatpush2.bf16.msra.mxu0 0
    %1291 = vmatprep.subr.bf16.mxu0 0
    %1292 = vmatpush2.bf16.msra.mxu0 0
    %1293 = vmatprep.subr.bf16.mxu0 0
    %1294 = vmatpush2.bf16.msra.mxu0 0
    %1295 = vmatprep.subr.bf16.mxu0 0
    %1296 = vmatpush2.bf16.msra.mxu0 0
    %1297 = vmatprep.subr.bf16.mxu0 0
    %1298 = vmatpush2.bf16.msra.mxu0 0
    %1299 = vmatprep.mubr.bf16.mxu0 0
    %1300 = vmatmul.mubr.bf16.gmra.mxu0 %v1265
    %v1301 = vpop.f32.mrf.mxu0
    %v1302 = vadd.f32 0.0, %v1301
    %v1303 = vpop.f32.mrf.mxu0
    %v1304 = vpop.f32.mrf.mxu0
    %v1305 = vpop.f32.mrf.mxu0
    %1306 = vdwg.mxu0
    %v1311 = vunpack.c.l.b16 %v1240
    %v1312 = vunpack.c.l.b16 %v1241
    %v1313 = vunpack.c.l.b16 %v1242
    %v1314 = vunpack.c.l.b16 %v1243
    %v1315 = vpack.c.b16 %v1312, %v1311
    %v1316 = vpack.c.b16 %v1314, %v1313
    %v1320 = vsel %vm397, %v1233, 0
    %1322 = vmatprep.subr.bf16.mxu0 0
    %1323 = vmatpush1.bf16.msra.mxu0 0
    %1324 = vmatprep.subr.bf16.mxu0 0
    %1325 = vmatpush1.bf16.msra.mxu0 0
    %1326 = vmatprep.subr.bf16.mxu0 0
    %1327 = vmatpush1.bf16.msra.mxu0 0
    %1328 = vmatprep.subr.bf16.mxu0 0
    %1329 = vmatpush1.bf16.msra.mxu0 0
    %1330 = vmatprep.subr.bf16.mxu0 0
    %1331 = vmatpush1.bf16.msra.mxu0 0
    %1332 = vmatprep.subr.bf16.mxu0 0
    %1333 = vmatpush1.bf16.msra.mxu0 0
    %1334 = vmatprep.subr.bf16.mxu0 0
    %1335 = vmatpush1.bf16.msra.mxu0 %v1316
    %1336 = vmatprep.subr.bf16.mxu0 0
    %1337 = vmatpush1.bf16.msra.mxu0 %v1315
    %1338 = vmatprep.subr.bf16.mxu0 0
    %1339 = vmatpush2.bf16.msra.mxu0 0
    %1340 = vmatprep.subr.bf16.mxu0 0
    %1341 = vmatpush2.bf16.msra.mxu0 0
    %1342 = vmatprep.subr.bf16.mxu0 0
    %1343 = vmatpush2.bf16.msra.mxu0 0
    %1344 = vmatprep.subr.bf16.mxu0 0
    %1345 = vmatpush2.bf16.msra.mxu0 0
    %1346 = vmatprep.subr.bf16.mxu0 0
    %1347 = vmatpush2.bf16.msra.mxu0 0
    %1348 = vmatprep.subr.bf16.mxu0 0
    %1349 = vmatpush2.bf16.msra.mxu0 0
    %1350 = vmatprep.subr.bf16.mxu0 0
    %1351 = vmatpush2.bf16.msra.mxu0 0
    %1352 = vmatprep.subr.bf16.mxu0 0
    %1353 = vmatpush2.bf16.msra.mxu0 0
    %1354 = vmatprep.mubr.bf16.mxu0 0
    %1355 = vmatmul.mubr.bf16.gmra.mxu0 %v1320
    %v1356 = vpop.f32.mrf.mxu0
    %v1357 = vadd.f32 0.0, %v1356
    %v1358 = vpop.f32.mrf.mxu0
    %v1359 = vpop.f32.mrf.mxu0
    %v1360 = vpop.f32.mrf.mxu0
    %1361 = vdwg.mxu0
    %v1366 = vunpack.c.l.b16 %v1244
    %v1367 = vunpack.c.l.b16 %v1245
    %v1368 = vunpack.c.l.b16 %v1246
    %v1369 = vunpack.c.l.b16 %v1247
    %v1370 = vpack.c.b16 %v1367, %v1366
    %v1371 = vpack.c.b16 %v1369, %v1368
    %v1375 = vsel %vm397, %v1234, 0
    %1377 = vmatprep.subr.bf16.mxu0 0
    %1378 = vmatpush1.bf16.msra.mxu0 0
    %1379 = vmatprep.subr.bf16.mxu0 0
    %1380 = vmatpush1.bf16.msra.mxu0 0
    %1381 = vmatprep.subr.bf16.mxu0 0
    %1382 = vmatpush1.bf16.msra.mxu0 0
    %1383 = vmatprep.subr.bf16.mxu0 0
    %1384 = vmatpush1.bf16.msra.mxu0 0
    %1385 = vmatprep.subr.bf16.mxu0 0
    %1386 = vmatpush1.bf16.msra.mxu0 0
    %1387 = vmatprep.subr.bf16.mxu0 0
    %1388 = vmatpush1.bf16.msra.mxu0 0
    %1389 = vmatprep.subr.bf16.mxu0 0
    %1390 = vmatpush1.bf16.msra.mxu0 %v1371
    %1391 = vmatprep.subr.bf16.mxu0 0
    %1392 = vmatpush1.bf16.msra.mxu0 %v1370
    %1393 = vmatprep.subr.bf16.mxu0 0
    %1394 = vmatpush2.bf16.msra.mxu0 0
    %1395 = vmatprep.subr.bf16.mxu0 0
    %1396 = vmatpush2.bf16.msra.mxu0 0
    %1397 = vmatprep.subr.bf16.mxu0 0
    %1398 = vmatpush2.bf16.msra.mxu0 0
    %1399 = vmatprep.subr.bf16.mxu0 0
    %1400 = vmatpush2.bf16.msra.mxu0 0
    %1401 = vmatprep.subr.bf16.mxu0 0
    %1402 = vmatpush2.bf16.msra.mxu0 0
    %1403 = vmatprep.subr.bf16.mxu0 0
    %1404 = vmatpush2.bf16.msra.mxu0 0
    %1405 = vmatprep.subr.bf16.mxu0 0
    %1406 = vmatpush2.bf16.msra.mxu0 0
    %1407 = vmatprep.subr.bf16.mxu0 0
    %1408 = vmatpush2.bf16.msra.mxu0 0
    %1409 = vmatprep.mubr.bf16.mxu0 0
    %1410 = vmatmul.mubr.bf16.gmra.mxu0 %v1375
    %v1411 = vpop.f32.mrf.mxu0
    %v1412 = vadd.f32 0.0, %v1411
    %v1413 = vpop.f32.mrf.mxu0
    %v1414 = vpop.f32.mrf.mxu0
    %v1415 = vpop.f32.mrf.mxu0
    %1416 = vdwg.mxu0
    %v1421 = vunpack.c.l.b16 %v1248
    %v1422 = vunpack.c.l.b16 %v1249
    %v1423 = vunpack.c.l.b16 %v1250
    %v1424 = vunpack.c.l.b16 %v1251
    %v1425 = vpack.c.b16 %v1422, %v1421
    %v1426 = vpack.c.b16 %v1424, %v1423
    %v1430 = vsel %vm397, %v1235, 0
    %1432 = vmatprep.subr.bf16.mxu0 0
    %1433 = vmatpush1.bf16.msra.mxu0 0
    %1434 = vmatprep.subr.bf16.mxu0 0
    %1435 = vmatpush1.bf16.msra.mxu0 0
    %1436 = vmatprep.subr.bf16.mxu0 0
    %1437 = vmatpush1.bf16.msra.mxu0 0
    %1438 = vmatprep.subr.bf16.mxu0 0
    %1439 = vmatpush1.bf16.msra.mxu0 0
    %1440 = vmatprep.subr.bf16.mxu0 0
    %1441 = vmatpush1.bf16.msra.mxu0 0
    %1442 = vmatprep.subr.bf16.mxu0 0
    %1443 = vmatpush1.bf16.msra.mxu0 0
    %1444 = vmatprep.subr.bf16.mxu0 0
    %1445 = vmatpush1.bf16.msra.mxu0 %v1426
    %1446 = vmatprep.subr.bf16.mxu0 0
    %1447 = vmatpush1.bf16.msra.mxu0 %v1425
    %1448 = vmatprep.subr.bf16.mxu0 0
    %1449 = vmatpush2.bf16.msra.mxu0 0
    %1450 = vmatprep.subr.bf16.mxu0 0
    %1451 = vmatpush2.bf16.msra.mxu0 0
    %1452 = vmatprep.subr.bf16.mxu0 0
    %1453 = vmatpush2.bf16.msra.mxu0 0
    %1454 = vmatprep.subr.bf16.mxu0 0
    %1455 = vmatpush2.bf16.msra.mxu0 0
    %1456 = vmatprep.subr.bf16.mxu0 0
    %1457 = vmatpush2.bf16.msra.mxu0 0
    %1458 = vmatprep.subr.bf16.mxu0 0
    %1459 = vmatpush2.bf16.msra.mxu0 0
    %1460 = vmatprep.subr.bf16.mxu0 0
    %1461 = vmatpush2.bf16.msra.mxu0 0
    %1462 = vmatprep.subr.bf16.mxu0 0
    %1463 = vmatpush2.bf16.msra.mxu0 0
    %1464 = vmatprep.mubr.bf16.mxu0 0
    %1465 = vmatmul.mubr.bf16.gmra.mxu0 %v1430
    %v1466 = vpop.f32.mrf.mxu0
    %v1467 = vadd.f32 0.0, %v1466
    %v1468 = vpop.f32.mrf.mxu0
    %v1469 = vpop.f32.mrf.mxu0
    %v1470 = vpop.f32.mrf.mxu0
    %1471 = vdwg.mxu0
    %v1472 = vadd.f32 %v1302, %v1357
    %v1473 = vadd.f32 %v1472, %v1412
    %v1474 = vadd.f32 %v1473, %v1467
    %v1475 = vpack.c.bf16 %v1089, %v1089
    %v1476 = vpack.c.bf16 %v1135, %v1135
    %v1477 = vpack.c.bf16 %v1181, %v1181
    %v1478 = vpack.c.bf16 %v1227, %v1227
    %v1479 = vld [vmem:[#allocation4] sm:$0xf]
    %v1480 = vld [vmem:[#allocation4 + $0x4] sm:$0xf]
    %v1481 = vld [vmem:[#allocation4 + $0x8] sm:$0xf]
    %v1482 = vld [vmem:[#allocation4 + $0xc] sm:$0xf]
    %v1483 = vld [vmem:[#allocation4 + $0x10] sm:$0xf]
    %v1484 = vld [vmem:[#allocation4 + $0x14] sm:$0xf]
    %v1485 = vld [vmem:[#allocation4 + $0x18] sm:$0xf]
    %v1486 = vld [vmem:[#allocation4 + $0x1c] sm:$0xf]
    %v1487 = vld [vmem:[#allocation4 + $0x20] sm:$0xf]
    %v1488 = vld [vmem:[#allocation4 + $0x24] sm:$0xf]
    %v1489 = vld [vmem:[#allocation4 + $0x28] sm:$0xf]
    %v1490 = vld [vmem:[#allocation4 + $0x2c] sm:$0xf]
    %v1491 = vld [vmem:[#allocation4 + $0x30] sm:$0xf]
    %v1492 = vld [vmem:[#allocation4 + $0x34] sm:$0xf]
    %v1493 = vld [vmem:[#allocation4 + $0x38] sm:$0xf]
    %v1494 = vld [vmem:[#allocation4 + $0x3c] sm:$0xf]
    %v1499 = vunpack.c.l.b16 %v1479
    %v1500 = vunpack.c.l.b16 %v1480
    %v1501 = vunpack.c.l.b16 %v1481
    %v1502 = vunpack.c.l.b16 %v1482
    %v1503 = vpack.c.b16 %v1500, %v1499
    %v1504 = vpack.c.b16 %v1502, %v1501
    %v1508 = vsel %vm397, %v1475, 0
    %1510 = vmatprep.subr.bf16.mxu0 0
    %1511 = vmatpush1.bf16.msra.mxu0 0
    %1512 = vmatprep.subr.bf16.mxu0 0
    %1513 = vmatpush1.bf16.msra.mxu0 0
    %1514 = vmatprep.subr.bf16.mxu0 0
    %1515 = vmatpush1.bf16.msra.mxu0 0
    %1516 = vmatprep.subr.bf16.mxu0 0
    %1517 = vmatpush1.bf16.msra.mxu0 0
    %1518 = vmatprep.subr.bf16.mxu0 0
    %1519 = vmatpush1.bf16.msra.mxu0 0
    %1520 = vmatprep.subr.bf16.mxu0 0
    %1521 = vmatpush1.bf16.msra.mxu0 0
    %1522 = vmatprep.subr.bf16.mxu0 0
    %1523 = vmatpush1.bf16.msra.mxu0 %v1504
    %1524 = vmatprep.subr.bf16.mxu0 0
    %1525 = vmatpush1.bf16.msra.mxu0 %v1503
    %1526 = vmatprep.subr.bf16.mxu0 0
    %1527 = vmatpush2.bf16.msra.mxu0 0
    %1528 = vmatprep.subr.bf16.mxu0 0
    %1529 = vmatpush2.bf16.msra.mxu0 0
    %1530 = vmatprep.subr.bf16.mxu0 0
    %1531 = vmatpush2.bf16.msra.mxu0 0
    %1532 = vmatprep.subr.bf16.mxu0 0
    %1533 = vmatpush2.bf16.msra.mxu0 0
    %1534 = vmatprep.subr.bf16.mxu0 0
    %1535 = vmatpush2.bf16.msra.mxu0 0
    %1536 = vmatprep.subr.bf16.mxu0 0
    %1537 = vmatpush2.bf16.msra.mxu0 0
    %1538 = vmatprep.subr.bf16.mxu0 0
    %1539 = vmatpush2.bf16.msra.mxu0 0
    %1540 = vmatprep.subr.bf16.mxu0 0
    %1541 = vmatpush2.bf16.msra.mxu0 0
    %1542 = vmatprep.mubr.bf16.mxu0 0
    %1543 = vmatmul.mubr.bf16.gmra.mxu0 %v1508
    %v1544 = vpop.f32.mrf.mxu0
    %v1545 = vadd.f32 0.0, %v1544
    %v1546 = vpop.f32.mrf.mxu0
    %v1547 = vpop.f32.mrf.mxu0
    %v1548 = vpop.f32.mrf.mxu0
    %1549 = vdwg.mxu0
    %v1554 = vunpack.c.l.b16 %v1483
    %v1555 = vunpack.c.l.b16 %v1484
    %v1556 = vunpack.c.l.b16 %v1485
    %v1557 = vunpack.c.l.b16 %v1486
    %v1558 = vpack.c.b16 %v1555, %v1554
    %v1559 = vpack.c.b16 %v1557, %v1556
    %v1563 = vsel %vm397, %v1476, 0
    %1565 = vmatprep.subr.bf16.mxu0 0
    %1566 = vmatpush1.bf16.msra.mxu0 0
    %1567 = vmatprep.subr.bf16.mxu0 0
    %1568 = vmatpush1.bf16.msra.mxu0 0
    %1569 = vmatprep.subr.bf16.mxu0 0
    %1570 = vmatpush1.bf16.msra.mxu0 0
    %1571 = vmatprep.subr.bf16.mxu0 0
    %1572 = vmatpush1.bf16.msra.mxu0 0
    %1573 = vmatprep.subr.bf16.mxu0 0
    %1574 = vmatpush1.bf16.msra.mxu0 0
    %1575 = vmatprep.subr.bf16.mxu0 0
    %1576 = vmatpush1.bf16.msra.mxu0 0
    %1577 = vmatprep.subr.bf16.mxu0 0
    %1578 = vmatpush1.bf16.msra.mxu0 %v1559
    %1579 = vmatprep.subr.bf16.mxu0 0
    %1580 = vmatpush1.bf16.msra.mxu0 %v1558
    %1581 = vmatprep.subr.bf16.mxu0 0
    %1582 = vmatpush2.bf16.msra.mxu0 0
    %1583 = vmatprep.subr.bf16.mxu0 0
    %1584 = vmatpush2.bf16.msra.mxu0 0
    %1585 = vmatprep.subr.bf16.mxu0 0
    %1586 = vmatpush2.bf16.msra.mxu0 0
    %1587 = vmatprep.subr.bf16.mxu0 0
    %1588 = vmatpush2.bf16.msra.mxu0 0
    %1589 = vmatprep.subr.bf16.mxu0 0
    %1590 = vmatpush2.bf16.msra.mxu0 0
    %1591 = vmatprep.subr.bf16.mxu0 0
    %1592 = vmatpush2.bf16.msra.mxu0 0
    %1593 = vmatprep.subr.bf16.mxu0 0
    %1594 = vmatpush2.bf16.msra.mxu0 0
    %1595 = vmatprep.subr.bf16.mxu0 0
    %1596 = vmatpush2.bf16.msra.mxu0 0
    %1597 = vmatprep.mubr.bf16.mxu0 0
    %1598 = vmatmul.mubr.bf16.gmra.mxu0 %v1563
    %v1599 = vpop.f32.mrf.mxu0
    %v1600 = vadd.f32 0.0, %v1599
    %v1601 = vpop.f32.mrf.mxu0
    %v1602 = vpop.f32.mrf.mxu0
    %v1603 = vpop.f32.mrf.mxu0
    %1604 = vdwg.mxu0
    %v1609 = vunpack.c.l.b16 %v1487
    %v1610 = vunpack.c.l.b16 %v1488
    %v1611 = vunpack.c.l.b16 %v1489
    %v1612 = vunpack.c.l.b16 %v1490
    %v1613 = vpack.c.b16 %v1610, %v1609
    %v1614 = vpack.c.b16 %v1612, %v1611
    %v1618 = vsel %vm397, %v1477, 0
    %1620 = vmatprep.subr.bf16.mxu0 0
    %1621 = vmatpush1.bf16.msra.mxu0 0
    %1622 = vmatprep.subr.bf16.mxu0 0
    %1623 = vmatpush1.bf16.msra.mxu0 0
    %1624 = vmatprep.subr.bf16.mxu0 0
    %1625 = vmatpush1.bf16.msra.mxu0 0
    %1626 = vmatprep.subr.bf16.mxu0 0
    %1627 = vmatpush1.bf16.msra.mxu0 0
    %1628 = vmatprep.subr.bf16.mxu0 0
    %1629 = vmatpush1.bf16.msra.mxu0 0
    %1630 = vmatprep.subr.bf16.mxu0 0
    %1631 = vmatpush1.bf16.msra.mxu0 0
    %1632 = vmatprep.subr.bf16.mxu0 0
    %1633 = vmatpush1.bf16.msra.mxu0 %v1614
    %1634 = vmatprep.subr.bf16.mxu0 0
    %1635 = vmatpush1.bf16.msra.mxu0 %v1613
    %1636 = vmatprep.subr.bf16.mxu0 0
    %1637 = vmatpush2.bf16.msra.mxu0 0
    %1638 = vmatprep.subr.bf16.mxu0 0
    %1639 = vmatpush2.bf16.msra.mxu0 0
    %1640 = vmatprep.subr.bf16.mxu0 0
    %1641 = vmatpush2.bf16.msra.mxu0 0
    %1642 = vmatprep.subr.bf16.mxu0 0
    %1643 = vmatpush2.bf16.msra.mxu0 0
    %1644 = vmatprep.subr.bf16.mxu0 0
    %1645 = vmatpush2.bf16.msra.mxu0 0
    %1646 = vmatprep.subr.bf16.mxu0 0
    %1647 = vmatpush2.bf16.msra.mxu0 0
    %1648 = vmatprep.subr.bf16.mxu0 0
    %1649 = vmatpush2.bf16.msra.mxu0 0
    %1650 = vmatprep.subr.bf16.mxu0 0
    %1651 = vmatpush2.bf16.msra.mxu0 0
    %1652 = vmatprep.mubr.bf16.mxu0 0
    %1653 = vmatmul.mubr.bf16.gmra.mxu0 %v1618
    %v1654 = vpop.f32.mrf.mxu0
    %v1655 = vadd.f32 0.0, %v1654
    %v1656 = vpop.f32.mrf.mxu0
    %v1657 = vpop.f32.mrf.mxu0
    %v1658 = vpop.f32.mrf.mxu0
    %1659 = vdwg.mxu0
    %v1664 = vunpack.c.l.b16 %v1491
    %v1665 = vunpack.c.l.b16 %v1492
    %v1666 = vunpack.c.l.b16 %v1493
    %v1667 = vunpack.c.l.b16 %v1494
    %v1668 = vpack.c.b16 %v1665, %v1664
    %v1669 = vpack.c.b16 %v1667, %v1666
    %v1673 = vsel %vm397, %v1478, 0
    %1675 = vmatprep.subr.bf16.mxu0 0
    %1676 = vmatpush1.bf16.msra.mxu0 0
    %1677 = vmatprep.subr.bf16.mxu0 0
    %1678 = vmatpush1.bf16.msra.mxu0 0
    %1679 = vmatprep.subr.bf16.mxu0 0
    %1680 = vmatpush1.bf16.msra.mxu0 0
    %1681 = vmatprep.subr.bf16.mxu0 0
    %1682 = vmatpush1.bf16.msra.mxu0 0
    %1683 = vmatprep.subr.bf16.mxu0 0
    %1684 = vmatpush1.bf16.msra.mxu0 0
    %1685 = vmatprep.subr.bf16.mxu0 0
    %1686 = vmatpush1.bf16.msra.mxu0 0
    %1687 = vmatprep.subr.bf16.mxu0 0
    %1688 = vmatpush1.bf16.msra.mxu0 %v1669
    %1689 = vmatprep.subr.bf16.mxu0 0
    %1690 = vmatpush1.bf16.msra.mxu0 %v1668
    %1691 = vmatprep.subr.bf16.mxu0 0
    %1692 = vmatpush2.bf16.msra.mxu0 0
    %1693 = vmatprep.subr.bf16.mxu0 0
    %1694 = vmatpush2.bf16.msra.mxu0 0
    %1695 = vmatprep.subr.bf16.mxu0 0
    %1696 = vmatpush2.bf16.msra.mxu0 0
    %1697 = vmatprep.subr.bf16.mxu0 0
    %1698 = vmatpush2.bf16.msra.mxu0 0
    %1699 = vmatprep.subr.bf16.mxu0 0
    %1700 = vmatpush2.bf16.msra.mxu0 0
    %1701 = vmatprep.subr.bf16.mxu0 0
    %1702 = vmatpush2.bf16.msra.mxu0 0
    %1703 = vmatprep.subr.bf16.mxu0 0
    %1704 = vmatpush2.bf16.msra.mxu0 0
    %1705 = vmatprep.subr.bf16.mxu0 0
    %1706 = vmatpush2.bf16.msra.mxu0 0
    %1707 = vmatprep.mubr.bf16.mxu0 0
    %1708 = vmatmul.mubr.bf16.gmra.mxu0 %v1673
    %v1709 = vpop.f32.mrf.mxu0
    %v1710 = vadd.f32 0.0, %v1709
    %v1711 = vpop.f32.mrf.mxu0
    %v1712 = vpop.f32.mrf.mxu0
    %v1713 = vpop.f32.mrf.mxu0
    %1714 = vdwg.mxu0
    %v1715 = vadd.f32 %v1545, %v1600
    %v1716 = vadd.f32 %v1715, %v1655
    %v1717 = vadd.f32 %v1716, %v1710
    %v1718 = vld [vmem:[%s4] sm:$0x1]
    %v1720 = vlaneseq
    %v1721 = vshrl.u32 %v1720, 7
    %v1722 = vsub.s32 0, %v1721
    %v1723 = vrot.slane %v1718, %v1722
    %v1725 = vadd.f32 %v1474, %v1723
    %v1726 = vadd.f32 %v1717, %v1723
    %v1727 = vadd.f32 %v88, %v1725
    %v1728 = vadd.f32 %v89, %v1726
    %v1729 = vpack.c.bf16 %v1728, %v1727
    %v1730 = vld [vmem:[#allocation6] sm:$0xff]
    %v1731 = vld [vmem:[#allocation6 + $0x8] sm:$0xff]
    %v1732 = vld [vmem:[#allocation6 + $0x10] sm:$0xff]
    %v1733 = vld [vmem:[#allocation6 + $0x18] sm:$0xff]
    %v1734 = vld [vmem:[#allocation6 + $0x20] sm:$0xff]
    %v1735 = vld [vmem:[#allocation6 + $0x28] sm:$0xff]
    %v1736 = vld [vmem:[#allocation6 + $0x30] sm:$0xff]
    %v1737 = vld [vmem:[#allocation6 + $0x38] sm:$0xff]
    %v1738 = vld [vmem:[#allocation6 + $0x40] sm:$0xff]
    %v1739 = vld [vmem:[#allocation6 + $0x48] sm:$0xff]
    %v1740 = vld [vmem:[#allocation6 + $0x50] sm:$0xff]
    %v1741 = vld [vmem:[#allocation6 + $0x58] sm:$0xff]
    %v1742 = vld [vmem:[#allocation6 + $0x60] sm:$0xff]
    %v1743 = vld [vmem:[#allocation6 + $0x68] sm:$0xff]
    %v1744 = vld [vmem:[#allocation6 + $0x70] sm:$0xff]
    %v1745 = vld [vmem:[#allocation6 + $0x78] sm:$0xff]
    %v1746 = vld [vmem:[%s6] sm:$0x3]
    %v1748 = vlaneseq
    %v1749 = vshrl.u32 %v1748, 7
    %v1750 = vsub.s32 0, %v1749
    %v1751 = vrot.slane %v1746, %v1750
    %v1752 = vlaneseq
    %v1753 = vshrl.u32 %v1752, 7
    %v1754 = vsub.s32 1, %v1753
    %v1755 = vrot.slane %v1746, %v1754
    %v1774 = vunpack.c.l.b16 %v1730
    %v1775 = vunpack.c.h.b16 %v1730
    %v1776 = vunpack.c.l.b16 %v1731
    %v1777 = vunpack.c.h.b16 %v1731
    %v1778 = vunpack.c.l.b16 %v1732
    %v1779 = vunpack.c.h.b16 %v1732
    %v1780 = vunpack.c.l.b16 %v1733
    %v1781 = vunpack.c.h.b16 %v1733
    %v1782 = vunpack.c.l.b16 %v1734
    %v1783 = vunpack.c.h.b16 %v1734
    %v1784 = vunpack.c.l.b16 %v1735
    %v1785 = vunpack.c.h.b16 %v1735
    %v1786 = vunpack.c.l.b16 %v1736
    %v1787 = vunpack.c.h.b16 %v1736
    %v1788 = vunpack.c.l.b16 %v1737
    %v1789 = vunpack.c.h.b16 %v1737
    %v1790 = vunpack.c.l.b16 %v1738
    %v1791 = vunpack.c.h.b16 %v1738
    %v1792 = vunpack.c.l.b16 %v1739
    %v1793 = vunpack.c.h.b16 %v1739
    %v1794 = vunpack.c.l.b16 %v1740
    %v1795 = vunpack.c.h.b16 %v1740
    %v1796 = vunpack.c.l.b16 %v1741
    %v1797 = vunpack.c.h.b16 %v1741
    %v1798 = vunpack.c.l.b16 %v1742
    %v1799 = vunpack.c.h.b16 %v1742
    %v1800 = vunpack.c.l.b16 %v1743
    %v1801 = vunpack.c.h.b16 %v1743
    %v1802 = vunpack.c.l.b16 %v1744
    %v1803 = vunpack.c.h.b16 %v1744
    %v1804 = vunpack.c.l.b16 %v1745
    %v1805 = vunpack.c.h.b16 %v1745
    %v1806 = vpack.c.b16 %v1776, %v1774
    %v1807 = vpack.c.b16 %v1777, %v1775
    %v1808 = vpack.c.b16 %v1780, %v1778
    %v1809 = vpack.c.b16 %v1781, %v1779
    %v1810 = vpack.c.b16 %v1784, %v1782
    %v1811 = vpack.c.b16 %v1785, %v1783
    %v1812 = vpack.c.b16 %v1788, %v1786
    %v1813 = vpack.c.b16 %v1789, %v1787
    %v1814 = vpack.c.b16 %v1792, %v1790
    %v1815 = vpack.c.b16 %v1793, %v1791
    %v1816 = vpack.c.b16 %v1796, %v1794
    %v1817 = vpack.c.b16 %v1797, %v1795
    %v1818 = vpack.c.b16 %v1800, %v1798
    %v1819 = vpack.c.b16 %v1801, %v1799
    %v1820 = vpack.c.b16 %v1804, %v1802
    %v1821 = vpack.c.b16 %v1805, %v1803
    %1838 = vmatprep.subr.bf16.mxu0 %v1821
    %1839 = vmatpush1.bf16.msra.mxu0 %v1820
    %1840 = vmatprep.subr.bf16.mxu0 %v1819
    %1841 = vmatpush1.bf16.msra.mxu0 %v1818
    %1842 = vmatprep.subr.bf16.mxu0 %v1817
    %1843 = vmatpush1.bf16.msra.mxu0 %v1816
    %1844 = vmatprep.subr.bf16.mxu0 %v1815
    %1845 = vmatpush1.bf16.msra.mxu0 %v1814
    %1846 = vmatprep.subr.bf16.mxu0 %v1813
    %1847 = vmatpush1.bf16.msra.mxu0 %v1812
    %1848 = vmatprep.subr.bf16.mxu0 %v1811
    %1849 = vmatpush1.bf16.msra.mxu0 %v1810
    %1850 = vmatprep.subr.bf16.mxu0 %v1809
    %1851 = vmatpush1.bf16.msra.mxu0 %v1808
    %1852 = vmatprep.subr.bf16.mxu0 %v1807
    %1853 = vmatpush1.bf16.msra.mxu0 %v1806
    %1854 = vmatprep.subr.bf16.mxu0 0
    %1855 = vmatpush2.bf16.msra.mxu0 0
    %1856 = vmatprep.subr.bf16.mxu0 0
    %1857 = vmatpush2.bf16.msra.mxu0 0
    %1858 = vmatprep.subr.bf16.mxu0 0
    %1859 = vmatpush2.bf16.msra.mxu0 0
    %1860 = vmatprep.subr.bf16.mxu0 0
    %1861 = vmatpush2.bf16.msra.mxu0 0
    %1862 = vmatprep.subr.bf16.mxu0 0
    %1863 = vmatpush2.bf16.msra.mxu0 0
    %1864 = vmatprep.subr.bf16.mxu0 0
    %1865 = vmatpush2.bf16.msra.mxu0 0
    %1866 = vmatprep.subr.bf16.mxu0 0
    %1867 = vmatpush2.bf16.msra.mxu0 0
    %1868 = vmatprep.subr.bf16.mxu0 0
    %1869 = vmatpush2.bf16.msra.mxu0 0
    %1870 = vmatprep.mubr.bf16.mxu0 0
    %1871 = vmatmul.mubr.bf16.gmra.mxu0 %v1729
    %v1872 = vpop.f32.mrf.mxu0
    %v1873 = vadd.f32 %v1751, %v1872
    %v1874 = vpop.f32.mrf.mxu0
    %v1875 = vadd.f32 %v1755, %v1874
    %v1876 = vpop.f32.mrf.mxu0
    %v1877 = vadd.f32 %v1751, %v1876
    %v1878 = vpop.f32.mrf.mxu0
    %v1879 = vadd.f32 %v1755, %v1878
    %1880 = vdwg.mxu0
    %v1881 = vmax.f32 %v1873, 0.0
    %v1882 = vmax.f32 %v1875, 0.0
    %v1883 = vmax.f32 %v1877, 0.0
    %v1884 = vmax.f32 %v1879, 0.0
    %v1885 = vpack.c.bf16 %v1883, %v1881
    %v1886 = vpack.c.bf16 %v1884, %v1882
    %v1887 = vld [vmem:[#allocation7] sm:$0xf]
    %v1888 = vld [vmem:[#allocation7 + $0x4] sm:$0xf]
    %v1889 = vld [vmem:[#allocation7 + $0x8] sm:$0xf]
    %v1890 = vld [vmem:[#allocation7 + $0xc] sm:$0xf]
    %v1891 = vld [vmem:[#allocation7 + $0x10] sm:$0xf]
    %v1892 = vld [vmem:[#allocation7 + $0x14] sm:$0xf]
    %v1893 = vld [vmem:[#allocation7 + $0x18] sm:$0xf]
    %v1894 = vld [vmem:[#allocation7 + $0x1c] sm:$0xf]
    %v1895 = vld [vmem:[#allocation7 + $0x20] sm:$0xf]
    %v1896 = vld [vmem:[#allocation7 + $0x24] sm:$0xf]
    %v1897 = vld [vmem:[#allocation7 + $0x28] sm:$0xf]
    %v1898 = vld [vmem:[#allocation7 + $0x2c] sm:$0xf]
    %v1899 = vld [vmem:[#allocation7 + $0x30] sm:$0xf]
    %v1900 = vld [vmem:[#allocation7 + $0x34] sm:$0xf]
    %v1901 = vld [vmem:[#allocation7 + $0x38] sm:$0xf]
    %v1902 = vld [vmem:[#allocation7 + $0x3c] sm:$0xf]
    %v1903 = vld [vmem:[#allocation7 + $0x40] sm:$0xf]
    %v1904 = vld [vmem:[#allocation7 + $0x44] sm:$0xf]
    %v1905 = vld [vmem:[#allocation7 + $0x48] sm:$0xf]
    %v1906 = vld [vmem:[#allocation7 + $0x4c] sm:$0xf]
    %v1907 = vld [vmem:[#allocation7 + $0x50] sm:$0xf]
    %v1908 = vld [vmem:[#allocation7 + $0x54] sm:$0xf]
    %v1909 = vld [vmem:[#allocation7 + $0x58] sm:$0xf]
    %v1910 = vld [vmem:[#allocation7 + $0x5c] sm:$0xf]
    %v1911 = vld [vmem:[#allocation7 + $0x60] sm:$0xf]
    %v1912 = vld [vmem:[#allocation7 + $0x64] sm:$0xf]
    %v1913 = vld [vmem:[#allocation7 + $0x68] sm:$0xf]
    %v1914 = vld [vmem:[#allocation7 + $0x6c] sm:$0xf]
    %v1915 = vld [vmem:[#allocation7 + $0x70] sm:$0xf]
    %v1916 = vld [vmem:[#allocation7 + $0x74] sm:$0xf]
    %v1917 = vld [vmem:[#allocation7 + $0x78] sm:$0xf]
    %v1918 = vld [vmem:[#allocation7 + $0x7c] sm:$0xf]
    %v1919 = vld [vmem:[%s8] sm:$0x1]
    %v1921 = vlaneseq
    %v1922 = vshrl.u32 %v1921, 7
    %v1923 = vsub.s32 0, %v1922
    %v1924 = vrot.slane %v1919, %v1923
    %v1958 = vunpack.c.l.b16 %v1887
    %v1959 = vunpack.c.l.b16 %v1888
    %v1960 = vunpack.c.l.b16 %v1889
    %v1961 = vunpack.c.l.b16 %v1890
    %v1962 = vunpack.c.l.b16 %v1891
    %v1963 = vunpack.c.l.b16 %v1892
    %v1964 = vunpack.c.l.b16 %v1893
    %v1965 = vunpack.c.l.b16 %v1894
    %v1966 = vunpack.c.l.b16 %v1895
    %v1967 = vunpack.c.l.b16 %v1896
    %v1968 = vunpack.c.l.b16 %v1897
    %v1969 = vunpack.c.l.b16 %v1898
    %v1970 = vunpack.c.l.b16 %v1899
    %v1971 = vunpack.c.l.b16 %v1900
    %v1972 = vunpack.c.l.b16 %v1901
    %v1973 = vunpack.c.l.b16 %v1902
    %v1974 = vunpack.c.l.b16 %v1903
    %v1975 = vunpack.c.l.b16 %v1904
    %v1976 = vunpack.c.l.b16 %v1905
    %v1977 = vunpack.c.l.b16 %v1906
    %v1978 = vunpack.c.l.b16 %v1907
    %v1979 = vunpack.c.l.b16 %v1908
    %v1980 = vunpack.c.l.b16 %v1909
    %v1981 = vunpack.c.l.b16 %v1910
    %v1982 = vunpack.c.l.b16 %v1911
    %v1983 = vunpack.c.l.b16 %v1912
    %v1984 = vunpack.c.l.b16 %v1913
    %v1985 = vunpack.c.l.b16 %v1914
    %v1986 = vunpack.c.l.b16 %v1915
    %v1987 = vunpack.c.l.b16 %v1916
    %v1988 = vunpack.c.l.b16 %v1917
    %v1989 = vunpack.c.l.b16 %v1918
    %v1990 = vpack.c.b16 %v1959, %v1958
    %v1991 = vpack.c.b16 %v1961, %v1960
    %v1992 = vpack.c.b16 %v1963, %v1962
    %v1993 = vpack.c.b16 %v1965, %v1964
    %v1994 = vpack.c.b16 %v1967, %v1966
    %v1995 = vpack.c.b16 %v1969, %v1968
    %v1996 = vpack.c.b16 %v1971, %v1970
    %v1997 = vpack.c.b16 %v1973, %v1972
    %v1998 = vpack.c.b16 %v1975, %v1974
    %v1999 = vpack.c.b16 %v1977, %v1976
    %v2000 = vpack.c.b16 %v1979, %v1978
    %v2001 = vpack.c.b16 %v1981, %v1980
    %v2002 = vpack.c.b16 %v1983, %v1982
    %v2003 = vpack.c.b16 %v1985, %v1984
    %v2004 = vpack.c.b16 %v1987, %v1986
    %v2005 = vpack.c.b16 %v1989, %v1988
    %2022 = vmatprep.subr.bf16.mxu0 0
    %2023 = vmatpush1.bf16.msra.mxu0 %v1997
    %2024 = vmatprep.subr.bf16.mxu0 0
    %2025 = vmatpush1.bf16.msra.mxu0 %v1996
    %2026 = vmatprep.subr.bf16.mxu0 0
    %2027 = vmatpush1.bf16.msra.mxu0 %v1995
    %2028 = vmatprep.subr.bf16.mxu0 0
    %2029 = vmatpush1.bf16.msra.mxu0 %v1994
    %2030 = vmatprep.subr.bf16.mxu0 0
    %2031 = vmatpush1.bf16.msra.mxu0 %v1993
    %2032 = vmatprep.subr.bf16.mxu0 0
    %2033 = vmatpush1.bf16.msra.mxu0 %v1992
    %2034 = vmatprep.subr.bf16.mxu0 0
    %2035 = vmatpush1.bf16.msra.mxu0 %v1991
    %2036 = vmatprep.subr.bf16.mxu0 0
    %2037 = vmatpush1.bf16.msra.mxu0 %v1990
    %2038 = vmatprep.subr.bf16.mxu0 0
    %2039 = vmatpush2.bf16.msra.mxu0 %v2005
    %2040 = vmatprep.subr.bf16.mxu0 0
    %2041 = vmatpush2.bf16.msra.mxu0 %v2004
    %2042 = vmatprep.subr.bf16.mxu0 0
    %2043 = vmatpush2.bf16.msra.mxu0 %v2003
    %2044 = vmatprep.subr.bf16.mxu0 0
    %2045 = vmatpush2.bf16.msra.mxu0 %v2002
    %2046 = vmatprep.subr.bf16.mxu0 0
    %2047 = vmatpush2.bf16.msra.mxu0 %v2001
    %2048 = vmatprep.subr.bf16.mxu0 0
    %2049 = vmatpush2.bf16.msra.mxu0 %v2000
    %2050 = vmatprep.subr.bf16.mxu0 0
    %2051 = vmatpush2.bf16.msra.mxu0 %v1999
    %2052 = vmatprep.subr.bf16.mxu0 0
    %2053 = vmatpush2.bf16.msra.mxu0 %v1998
    %2054 = vmatprep.mubr.bf16.mxu0 %v1886
    %2055 = vmatmul.mubr.bf16.gmra.mxu0 %v1885
    %v2056 = vpop.f32.mrf.mxu0
    %v2057 = vadd.f32 %v1924, %v2056
    %v2058 = vpop.f32.mrf.mxu0
    %v2059 = vpop.f32.mrf.mxu0
    %v2060 = vadd.f32 %v1924, %v2059
    %v2061 = vpop.f32.mrf.mxu0
    %2062 = vdwg.mxu0
    %v2063 = vadd.f32 %v1727, %v2057
    %v2064 = vadd.f32 %v1728, %v2060
    %2065 = vadd.xlane.f32.xlu0 %v2063
    %v2066 = vpop.xlane.xlu0 %2065
    %2067 = vadd.xlane.f32.xlu0 %v2064
    %v2068 = vpop.xlane.xlu0 %2067
    %v2069 = vadd.f32 %v2066, %v2068
    %v2070 = vmul.f32 %v2069, 0.00390625
    %2072 = vset.pattern.permute.xlu0 0
    %2073 = vperm.xlu0 %2072, %v2070
    %v2074 = vpop.permute.xlu0 %2073
    %v2076 = vsub.f32 %v2063, %v2074
    %v2077 = vsub.f32 %v2064, %v2074
    %v2078 = vmul.f32 %v2076, %v2076
    %v2079 = vmul.f32 %v2077, %v2077
    %2080 = vadd.xlane.f32.xlu0 %v2078
    %v2081 = vpop.xlane.xlu0 %2080
    %2082 = vadd.xlane.f32.xlu0 %v2079
    %v2083 = vpop.xlane.xlu0 %2082
    %v2084 = vadd.f32 %v2081, %v2083
    %v2085 = vmul.f32 %v2084, 0.00390625
    %v2086 = vadd.f32 %v2085, 1e-06
    %v2087 = vrsqrt.pop %v2086
    %2089 = vset.pattern.permute.xlu0 0
    %2090 = vperm.xlu0 %2089, %v2087
    %v2091 = vpop.permute.xlu0 %2090
    %v2093 = vmul.f32 %v2076, %v2091
    %v2094 = vmul.f32 %v2077, %v2091
    %2095 = vst [vmem:[%s9] sm:$0xff] %v2093
    %2096 = vst [vmem:[%s9 + $0x8] sm:$0xff] %v2094
    // Predicated region
    $region54: #{transformer_forward.1} parent=1 // pred_check
      _
    $region55: #{transformer_forward.1} parent=1 // pred_check_branch
      %2098 = sbr.rel (0) target = $region57
    $region56: #{transformer_forward.1} parent=1 // pred_region
      _
    $region57: #{transformer_forward.1} parent=1 // pred_fallthru
      _
    // Predicated region
    $region58: #{transformer_forward.1} parent=1 // pred_check
      _
    $region59: #{transformer_forward.1} parent=1 // pred_check_branch
      %2100 = sbr.rel (0) target = $region61
    $region60: #{transformer_forward.1} parent=1 // pred_region
      _
    $region61: #{transformer_forward.1} parent=1 // pred_fallthru
      _
    %2101 = vsyncpa [#allocation3], 1
    %2102 = vsyncpa [#allocation5], 1
    %2103 = vsyncpa [#allocation8], 1

</llo_original>
